<compile_context>
chip_gen: v5e
topology: v5e:2x2
jax: 0.10.0
libtpu: 0.0.40
codegen_flags: <defaults>
</compile_context>

<pallas_src>
import jax
import jax.numpy as jnp
from jax import lax
from jax.experimental import pallas as pl
from jax.experimental.pallas import tpu as pltpu


# ----------------------------- Pallas kernel -------------------------------


def _fused_autoencoder_kernel(x_ref, enc_wih_ref, enc_whh_ref, enc_b_ref,
                              dec_wih_ref, dec_whh_ref, dec_b_ref,
                              out_w_ref, out_b_ref, y_ref):
    """Whole forward pass in one kernel invocation (no grid).

    x_ref:       [B, T*D]   lane-dense input, x[b, t*D:(t+1)*D] = x[b, t, :]
    enc_wih_ref: [D, 4H]    encoder W_ih^T, gate columns ordered (i, f, o, g)
    enc_whh_ref: [H, 4H]    encoder W_hh^T
    enc_b_ref:   [1, 4H]    encoder b_ih + b_hh
    dec_wih_ref: [H, 4H]    decoder W_ih^T
    dec_whh_ref: [H, 4H]    decoder W_hh^T
    dec_b_ref:   [1, 4H]    decoder b_ih + b_hh
    out_w_ref:   [H, D]     output Linear weight^T
    out_b_ref:   [1, D]     output Linear bias
    y_ref:       [B, T*D]   lane-dense output, y[b, t*D:(t+1)*D] = y[b, t, :]
    """
    B = x_ref.shape[0]
    H = enc_whh_ref.shape[0]
    D = out_w_ref.shape[1]
    T = x_ref.shape[1] // D
    f32 = jnp.float32

    def mm(a, b):
        # DEFAULT precision: single-pass bf16 MXU with f32 accumulation.
        return jnp.dot(a, b, preferred_element_type=f32)

    def lstm_step(gates, c):
        # Gate columns are (i, f, o, g): one sigmoid over the contiguous first
        # 3H lanes, one tanh over the last H lanes (no wasted EUP work).
        sig = jax.nn.sigmoid(gates[:, : 3 * H])
        i = sig[:, 0:H]
        f = sig[:, H:2 * H]
        o = sig[:, 2 * H:3 * H]
        g = jnp.tanh(gates[:, 3 * H:])
        c_new = f * c + i * g
        h_new = o * jnp.tanh(c_new)
        return h_new, c_new

    # ---------------- encoder + running max pool over time ----------------
    enc_wih = enc_wih_ref[...]
    enc_whh = enc_whh_ref[...]
    enc_b = enc_b_ref[...]

    h = jnp.zeros((B, H), f32)
    c = jnp.zeros((B, H), f32)
    pooled = None
    for t in range(T):                                    # statically unrolled
        x_t = x_ref[:, t * D:(t + 1) * D]                 # [B, D] static lane slice
        gates = mm(x_t, enc_wih) + enc_b + mm(h, enc_whh)
        h, c = lstm_step(gates, c)
        pooled = h if t == 0 else jnp.maximum(pooled, h)  # running max pool

    # ---------------- decoder (constant input = pooled) ----------------
    # Input-gate contribution is constant across time -> compute once.
    dec_xg = mm(pooled, dec_wih_ref[...]) + dec_b_ref[...]
    dec_whh = dec_whh_ref[...]
    out_w = out_w_ref[...]
    out_b = out_b_ref[...]

    h = jnp.zeros((B, H), f32)
    c = jnp.zeros((B, H), f32)
    for t in range(T):                                    # statically unrolled
        gates = dec_xg + mm(h, dec_whh)
        h, c = lstm_step(gates, c)
        # Output projection per step (off the recurrent critical path), written
        # straight into the lane-dense output slab (hidden states stay in vregs).
        y_ref[:, t * D:(t + 1) * D] = mm(h, out_w) + out_b


# ------------------------------- Wrapper ------------------------------------


@jax.jit
def lstm_autoencoder_forward(x, kparams):
    """x: [B, T, D] float32 (batch_first). Returns [B, T, D]. pooling='max'."""
    B, T, D = x.shape
    x_flat = x.reshape(B, T * D)          # zero-copy: row-major contiguous

    y_flat = pl.pallas_call(
        _fused_autoencoder_kernel,
        out_shape=jax.ShapeDtypeStruct((B, T * D), jnp.float32),
        in_specs=[pl.BlockSpec(memory_space=pltpu.MemorySpace.VMEM)] * 9,
        out_specs=pl.BlockSpec(memory_space=pltpu.MemorySpace.VMEM),
    )(x_flat,
      kparams["enc_wih"], kparams["enc_whh"], kparams["enc_b"],
      kparams["dec_wih"], kparams["dec_whh"], kparams["dec_b"],
      kparams["out_w"], kparams["out_b"])

    return y_flat.reshape(B, T, D)        # zero-copy


# --------------------------- Parameters & reference --------------------------


def init_params(key, input_dim, hidden_dim):
    """Deterministic synthetic parameters in PyTorch layout/order.

    LSTM weights: W_ih [4H, in], W_hh [4H, H], gate rows ordered (i, f, g, o);
    Linear: weight [out, in], bias [out].
    """
    H, D = hidden_dim, input_dim
    bound = 1.0 / jnp.sqrt(jnp.float32(H))
    ks = jax.random.split(key, 10)

    def u(k, shape):
        return jax.random.uniform(k, shape, jnp.float32, -bound, bound)

    return dict(
        enc_w_ih=u(ks[0], (4 * H, D)), enc_w_hh=u(ks[1], (4 * H, H)),
        enc_b_ih=u(ks[2], (4 * H,)), enc_b_hh=u(ks[3], (4 * H,)),
        dec_w_ih=u(ks[4], (4 * H, H)), dec_w_hh=u(ks[5], (4 * H, H)),
        dec_b_ih=u(ks[6], (4 * H,)), dec_b_hh=u(ks[7], (4 * H,)),
        out_w=u(ks[8], (D, H)), out_b=u(ks[9], (D,)),
    )


def prepare_kernel_params(params, hidden_dim):
    """PyTorch layout -> kernel layout.

    Transpose LSTM weights to [in, 4H], reorder gate blocks from PyTorch
    (i, f, g, o) to kernel (i, f, o, g), pre-sum the two biases, transpose the
    output Linear.  Done once, outside the per-call path.
    """
    H = hidden_dim

    def reorder(w):  # works for [4H, ...] matrices and [4H] vectors
        i, f, g, o = w[0:H], w[H:2 * H], w[2 * H:3 * H], w[3 * H:4 * H]
        return jnp.concatenate([i, f, o, g], axis=0)

    return dict(
        enc_wih=reorder(params["enc_w_ih"]).T,                              # [D, 4H]
        enc_whh=reorder(params["enc_w_hh"]).T,                              # [H, 4H]
        enc_b=reorder(params["enc_b_ih"] + params["enc_b_hh"])[None, :],    # [1, 4H]
        dec_wih=reorder(params["dec_w_ih"]).T,                              # [H, 4H]
        dec_whh=reorder(params["dec_w_hh"]).T,                              # [H, 4H]
        dec_b=reorder(params["dec_b_ih"] + params["dec_b_hh"])[None, :],    # [1, 4H]
        out_w=params["out_w"].T,                                            # [H, D]
        out_b=params["out_b"][None, :],                                     # [1, D]
    )


def _lstm_ref(x, w_ih, w_hh, b_ih, b_hh):
    """Pure-JAX LSTM reference, PyTorch layout & gate order (i, f, g, o)."""
    B = x.shape[0]
    H = w_hh.shape[1]
    wih_t, whh_t = w_ih.T, w_hh.T
    b = (b_ih + b_hh)[None, :]

    def step(carry, x_t):
        h, c = carry
        gates = jnp.dot(x_t, wih_t) + jnp.dot(h, whh_t) + b
        i, f, g, o = jnp.split(gates, 4, axis=-1)
        i, f, o = jax.nn.sigmoid(i), jax.nn.sigmoid(f), jax.nn.sigmoid(o)
        g = jnp.tanh(g)
        c = f * c + i * g
        h = o * jnp.tanh(c)
        return (h, c), h

    init = (jnp.zeros((B, H), jnp.float32), jnp.zeros((B, H), jnp.float32))
    _, hs = lax.scan(step, init, jnp.swapaxes(x, 0, 1))
    return jnp.swapaxes(hs, 0, 1)  # [B, T, H]


def reference_forward(x, params):
    enc = _lstm_ref(x, params["enc_w_ih"], params["enc_w_hh"],
                    params["enc_b_ih"], params["enc_b_hh"])
    pooled = enc.max(axis=1)                                     # max pooling
    dec_in = jnp.repeat(pooled[:, None, :], x.shape[1], axis=1)  # repeat T
    dec = _lstm_ref(dec_in, params["dec_w_ih"], params["dec_w_hh"],
                    params["dec_b_ih"], params["dec_b_hh"])
    return jnp.dot(dec, params["out_w"].T) + params["out_b"]


# --------------------------------- Main --------------------------------------

if __name__ == "__main__":
    B, T, D, H = 2, 8, 16, 32
    key = jax.random.PRNGKey(0)
    kx, kp = jax.random.split(key)

    x = jax.random.normal(kx, (B, T, D), jnp.float32)
    params = init_params(kp, input_dim=D, hidden_dim=H)
    kparams = prepare_kernel_params(params, hidden_dim=H)

    y = lstm_autoencoder_forward(x, kparams)
    y = jax.block_until_ready(y)

    y_ref = reference_forward(x, params)
    assert y.shape == (B, T, D)
    # The kernel uses DEFAULT-precision (bf16-input) MXU matmuls; bf16 rounding
    # accumulated through 2x8 serial recurrent steps can differ from the XLA
    # reference at the ~1e-3..1e-2 level, while any structural bug (gate order,
    # pooling, recurrence) produces O(0.1) errors - so this check stays sharp.
    assert jnp.allclose(y, y_ref, atol=2e-2, rtol=2e-2), "mismatch vs reference"

    print("KERNEL_OK")
</pallas_src>

<mosaic_0001>
module attributes {stable_mosaic.version = 11 : i64} {
  func.func @_fused_autoencoder_kernel(%arg0: memref<2x128xf32, #tpu.memory_space<vmem>>, %arg1: memref<16x128xf32, #tpu.memory_space<vmem>>, %arg2: memref<32x128xf32, #tpu.memory_space<vmem>>, %arg3: memref<1x128xf32, #tpu.memory_space<vmem>>, %arg4: memref<32x128xf32, #tpu.memory_space<vmem>>, %arg5: memref<32x128xf32, #tpu.memory_space<vmem>>, %arg6: memref<1x128xf32, #tpu.memory_space<vmem>>, %arg7: memref<32x16xf32, #tpu.memory_space<vmem>>, %arg8: memref<1x16xf32, #tpu.memory_space<vmem>>, %arg9: memref<2x128xf32, #tpu.memory_space<vmem>>) attributes {dimension_semantics = [], scalar_prefetch = 0 : i64, scratch_operands = 0 : i64, tpu.core_type = #tpu.core_type<tc>} {
    %c0 = arith.constant 0 : index
    %c0_0 = arith.constant 0 : index
    %0 = vector.load %arg1[%c0, %c0_0] : memref<16x128xf32, #tpu.memory_space<vmem>>, vector<16x128xf32>
    %c0_1 = arith.constant 0 : index
    %c0_2 = arith.constant 0 : index
    %1 = vector.load %arg2[%c0_1, %c0_2] : memref<32x128xf32, #tpu.memory_space<vmem>>, vector<32x128xf32>
    %c0_3 = arith.constant 0 : index
    %c0_4 = arith.constant 0 : index
    %2 = vector.load %arg3[%c0_3, %c0_4] : memref<1x128xf32, #tpu.memory_space<vmem>>, vector<1x128xf32>
    %cst = arith.constant 0.000000e+00 : f32
    %3 = vector.broadcast %cst : f32 to vector<2x32xf32>
    %cst_5 = arith.constant 0.000000e+00 : f32
    %4 = vector.broadcast %cst_5 : f32 to vector<2x32xf32>
    %c0_6 = arith.constant 0 : index
    %c0_7 = arith.constant 0 : index
    %5 = vector.load %arg0[%c0_6, %c0_7] : memref<2x128xf32, #tpu.memory_space<vmem>>, vector<2x16xf32>
    %cst_8 = arith.constant dense<0.000000e+00> : vector<2x128xf32>
    %6 = tpu.matmul %5, %0, %cst_8 {dimension_numbers = #tpu.dot_dimension_numbers<[1], [0], [0], [1], [0, 0, 1, 1], [], []>} : vector<2x16xf32>, vector<16x128xf32>, vector<2x128xf32> -> vector<2x128xf32>
    %7 = vector.broadcast %2 : vector<1x128xf32> to vector<2x128xf32>
    %8 = arith.addf %6, %7 : vector<2x128xf32>
    %cst_9 = arith.constant dense<0.000000e+00> : vector<2x128xf32>
    %9 = tpu.matmul %3, %1, %cst_9 {dimension_numbers = #tpu.dot_dimension_numbers<[1], [0], [0], [1], [0, 0, 1, 1], [], []>} : vector<2x32xf32>, vector<32x128xf32>, vector<2x128xf32> -> vector<2x128xf32>
    %10 = arith.addf %8, %9 : vector<2x128xf32>
    %11 = vector.extract_strided_slice %10 {offsets = [0, 0], sizes = [2, 96], strides = [1, 1]} : vector<2x128xf32> to vector<2x96xf32>
    %12 = arith.negf %11 : vector<2x96xf32>
    %13 = math.exp %12 : vector<2x96xf32>
    %cst_10 = arith.constant 1.000000e+00 : f32
    %14 = vector.broadcast %cst_10 : f32 to vector<2x96xf32>
    %15 = arith.addf %14, %13 : vector<2x96xf32>
    %16 = arith.divf %14, %15 : vector<2x96xf32>
    %17 = vector.extract_strided_slice %16 {offsets = [0, 0], sizes = [2, 32], strides = [1, 1]} : vector<2x96xf32> to vector<2x32xf32>
    %18 = vector.extract_strided_slice %16 {offsets = [0, 32], sizes = [2, 32], strides = [1, 1]} : vector<2x96xf32> to vector<2x32xf32>
    %19 = vector.extract_strided_slice %16 {offsets = [0, 64], sizes = [2, 32], strides = [1, 1]} : vector<2x96xf32> to vector<2x32xf32>
    %20 = vector.extract_strided_slice %10 {offsets = [0, 96], sizes = [2, 32], strides = [1, 1]} : vector<2x128xf32> to vector<2x32xf32>
    %21 = math.tanh %20 : vector<2x32xf32>
    %22 = arith.mulf %18, %4 : vector<2x32xf32>
    %23 = arith.mulf %17, %21 : vector<2x32xf32>
    %24 = arith.addf %22, %23 : vector<2x32xf32>
    %25 = math.tanh %24 : vector<2x32xf32>
    %26 = arith.mulf %19, %25 : vector<2x32xf32>
    %c0_11 = arith.constant 0 : index
    %c16 = arith.constant 16 : index
    %27 = vector.load %arg0[%c0_11, %c16] : memref<2x128xf32, #tpu.memory_space<vmem>>, vector<2x16xf32>
    %cst_12 = arith.constant dense<0.000000e+00> : vector<2x128xf32>
    %28 = tpu.matmul %27, %0, %cst_12 {dimension_numbers = #tpu.dot_dimension_numbers<[1], [0], [0], [1], [0, 0, 1, 1], [], []>} : vector<2x16xf32>, vector<16x128xf32>, vector<2x128xf32> -> vector<2x128xf32>
    %29 = vector.broadcast %2 : vector<1x128xf32> to vector<2x128xf32>
    %30 = arith.addf %28, %29 : vector<2x128xf32>
    %cst_13 = arith.constant dense<0.000000e+00> : vector<2x128xf32>
    %31 = tpu.matmul %26, %1, %cst_13 {dimension_numbers = #tpu.dot_dimension_numbers<[1], [0], [0], [1], [0, 0, 1, 1], [], []>} : vector<2x32xf32>, vector<32x128xf32>, vector<2x128xf32> -> vector<2x128xf32>
    %32 = arith.addf %30, %31 : vector<2x128xf32>
    %33 = vector.extract_strided_slice %32 {offsets = [0, 0], sizes = [2, 96], strides = [1, 1]} : vector<2x128xf32> to vector<2x96xf32>
    %34 = arith.negf %33 : vector<2x96xf32>
    %35 = math.exp %34 : vector<2x96xf32>
    %cst_14 = arith.constant 1.000000e+00 : f32
    %36 = vector.broadcast %cst_14 : f32 to vector<2x96xf32>
    %37 = arith.addf %36, %35 : vector<2x96xf32>
    %38 = arith.divf %36, %37 : vector<2x96xf32>
    %39 = vector.extract_strided_slice %38 {offsets = [0, 0], sizes = [2, 32], strides = [1, 1]} : vector<2x96xf32> to vector<2x32xf32>
    %40 = vector.extract_strided_slice %38 {offsets = [0, 32], sizes = [2, 32], strides = [1, 1]} : vector<2x96xf32> to vector<2x32xf32>
    %41 = vector.extract_strided_slice %38 {offsets = [0, 64], sizes = [2, 32], strides = [1, 1]} : vector<2x96xf32> to vector<2x32xf32>
    %42 = vector.extract_strided_slice %32 {offsets = [0, 96], sizes = [2, 32], strides = [1, 1]} : vector<2x128xf32> to vector<2x32xf32>
    %43 = math.tanh %42 : vector<2x32xf32>
    %44 = arith.mulf %40, %24 : vector<2x32xf32>
    %45 = arith.mulf %39, %43 : vector<2x32xf32>
    %46 = arith.addf %44, %45 : vector<2x32xf32>
    %47 = math.tanh %46 : vector<2x32xf32>
    %48 = arith.mulf %41, %47 : vector<2x32xf32>
    %49 = arith.maximumf %26, %48 : vector<2x32xf32>
    %c0_15 = arith.constant 0 : index
    %c32 = arith.constant 32 : index
    %50 = vector.load %arg0[%c0_15, %c32] : memref<2x128xf32, #tpu.memory_space<vmem>>, vector<2x16xf32>
    %cst_16 = arith.constant dense<0.000000e+00> : vector<2x128xf32>
    %51 = tpu.matmul %50, %0, %cst_16 {dimension_numbers = #tpu.dot_dimension_numbers<[1], [0], [0], [1], [0, 0, 1, 1], [], []>} : vector<2x16xf32>, vector<16x128xf32>, vector<2x128xf32> -> vector<2x128xf32>
    %52 = vector.broadcast %2 : vector<1x128xf32> to vector<2x128xf32>
    %53 = arith.addf %51, %52 : vector<2x128xf32>
    %cst_17 = arith.constant dense<0.000000e+00> : vector<2x128xf32>
    %54 = tpu.matmul %48, %1, %cst_17 {dimension_numbers = #tpu.dot_dimension_numbers<[1], [0], [0], [1], [0, 0, 1, 1], [], []>} : vector<2x32xf32>, vector<32x128xf32>, vector<2x128xf32> -> vector<2x128xf32>
    %55 = arith.addf %53, %54 : vector<2x128xf32>
    %56 = vector.extract_strided_slice %55 {offsets = [0, 0], sizes = [2, 96], strides = [1, 1]} : vector<2x128xf32> to vector<2x96xf32>
    %57 = arith.negf %56 : vector<2x96xf32>
    %58 = math.exp %57 : vector<2x96xf32>
    %cst_18 = arith.constant 1.000000e+00 : f32
    %59 = vector.broadcast %cst_18 : f32 to vector<2x96xf32>
    %60 = arith.addf %59, %58 : vector<2x96xf32>
    %61 = arith.divf %59, %60 : vector<2x96xf32>
    %62 = vector.extract_strided_slice %61 {offsets = [0, 0], sizes = [2, 32], strides = [1, 1]} : vector<2x96xf32> to vector<2x32xf32>
    %63 = vector.extract_strided_slice %61 {offsets = [0, 32], sizes = [2, 32], strides = [1, 1]} : vector<2x96xf32> to vector<2x32xf32>
    %64 = vector.extract_strided_slice %61 {offsets = [0, 64], sizes = [2, 32], strides = [1, 1]} : vector<2x96xf32> to vector<2x32xf32>
    %65 = vector.extract_strided_slice %55 {offsets = [0, 96], sizes = [2, 32], strides = [1, 1]} : vector<2x128xf32> to vector<2x32xf32>
    %66 = math.tanh %65 : vector<2x32xf32>
    %67 = arith.mulf %63, %46 : vector<2x32xf32>
    %68 = arith.mulf %62, %66 : vector<2x32xf32>
    %69 = arith.addf %67, %68 : vector<2x32xf32>
    %70 = math.tanh %69 : vector<2x32xf32>
    %71 = arith.mulf %64, %70 : vector<2x32xf32>
    %72 = arith.maximumf %49, %71 : vector<2x32xf32>
    %c0_19 = arith.constant 0 : index
    %c48 = arith.constant 48 : index
    %73 = vector.load %arg0[%c0_19, %c48] : memref<2x128xf32, #tpu.memory_space<vmem>>, vector<2x16xf32>
    %cst_20 = arith.constant dense<0.000000e+00> : vector<2x128xf32>
    %74 = tpu.matmul %73, %0, %cst_20 {dimension_numbers = #tpu.dot_dimension_numbers<[1], [0], [0], [1], [0, 0, 1, 1], [], []>} : vector<2x16xf32>, vector<16x128xf32>, vector<2x128xf32> -> vector<2x128xf32>
    %75 = vector.broadcast %2 : vector<1x128xf32> to vector<2x128xf32>
    %76 = arith.addf %74, %75 : vector<2x128xf32>
    %cst_21 = arith.constant dense<0.000000e+00> : vector<2x128xf32>
    %77 = tpu.matmul %71, %1, %cst_21 {dimension_numbers = #tpu.dot_dimension_numbers<[1], [0], [0], [1], [0, 0, 1, 1], [], []>} : vector<2x32xf32>, vector<32x128xf32>, vector<2x128xf32> -> vector<2x128xf32>
    %78 = arith.addf %76, %77 : vector<2x128xf32>
    %79 = vector.extract_strided_slice %78 {offsets = [0, 0], sizes = [2, 96], strides = [1, 1]} : vector<2x128xf32> to vector<2x96xf32>
    %80 = arith.negf %79 : vector<2x96xf32>
    %81 = math.exp %80 : vector<2x96xf32>
    %cst_22 = arith.constant 1.000000e+00 : f32
    %82 = vector.broadcast %cst_22 : f32 to vector<2x96xf32>
    %83 = arith.addf %82, %81 : vector<2x96xf32>
    %84 = arith.divf %82, %83 : vector<2x96xf32>
    %85 = vector.extract_strided_slice %84 {offsets = [0, 0], sizes = [2, 32], strides = [1, 1]} : vector<2x96xf32> to vector<2x32xf32>
    %86 = vector.extract_strided_slice %84 {offsets = [0, 32], sizes = [2, 32], strides = [1, 1]} : vector<2x96xf32> to vector<2x32xf32>
    %87 = vector.extract_strided_slice %84 {offsets = [0, 64], sizes = [2, 32], strides = [1, 1]} : vector<2x96xf32> to vector<2x32xf32>
    %88 = vector.extract_strided_slice %78 {offsets = [0, 96], sizes = [2, 32], strides = [1, 1]} : vector<2x128xf32> to vector<2x32xf32>
    %89 = math.tanh %88 : vector<2x32xf32>
    %90 = arith.mulf %86, %69 : vector<2x32xf32>
    %91 = arith.mulf %85, %89 : vector<2x32xf32>
    %92 = arith.addf %90, %91 : vector<2x32xf32>
    %93 = math.tanh %92 : vector<2x32xf32>
    %94 = arith.mulf %87, %93 : vector<2x32xf32>
    %95 = arith.maximumf %72, %94 : vector<2x32xf32>
    %c0_23 = arith.constant 0 : index
    %c64 = arith.constant 64 : index
    %96 = vector.load %arg0[%c0_23, %c64] : memref<2x128xf32, #tpu.memory_space<vmem>>, vector<2x16xf32>
    %cst_24 = arith.constant dense<0.000000e+00> : vector<2x128xf32>
    %97 = tpu.matmul %96, %0, %cst_24 {dimension_numbers = #tpu.dot_dimension_numbers<[1], [0], [0], [1], [0, 0, 1, 1], [], []>} : vector<2x16xf32>, vector<16x128xf32>, vector<2x128xf32> -> vector<2x128xf32>
    %98 = vector.broadcast %2 : vector<1x128xf32> to vector<2x128xf32>
    %99 = arith.addf %97, %98 : vector<2x128xf32>
    %cst_25 = arith.constant dense<0.000000e+00> : vector<2x128xf32>
    %100 = tpu.matmul %94, %1, %cst_25 {dimension_numbers = #tpu.dot_dimension_numbers<[1], [0], [0], [1], [0, 0, 1, 1], [], []>} : vector<2x32xf32>, vector<32x128xf32>, vector<2x128xf32> -> vector<2x128xf32>
    %101 = arith.addf %99, %100 : vector<2x128xf32>
    %102 = vector.extract_strided_slice %101 {offsets = [0, 0], sizes = [2, 96], strides = [1, 1]} : vector<2x128xf32> to vector<2x96xf32>
    %103 = arith.negf %102 : vector<2x96xf32>
    %104 = math.exp %103 : vector<2x96xf32>
    %cst_26 = arith.constant 1.000000e+00 : f32
    %105 = vector.broadcast %cst_26 : f32 to vector<2x96xf32>
    %106 = arith.addf %105, %104 : vector<2x96xf32>
    %107 = arith.divf %105, %106 : vector<2x96xf32>
    %108 = vector.extract_strided_slice %107 {offsets = [0, 0], sizes = [2, 32], strides = [1, 1]} : vector<2x96xf32> to vector<2x32xf32>
    %109 = vector.extract_strided_slice %107 {offsets = [0, 32], sizes = [2, 32], strides = [1, 1]} : vector<2x96xf32> to vector<2x32xf32>
    %110 = vector.extract_strided_slice %107 {offsets = [0, 64], sizes = [2, 32], strides = [1, 1]} : vector<2x96xf32> to vector<2x32xf32>
    %111 = vector.extract_strided_slice %101 {offsets = [0, 96], sizes = [2, 32], strides = [1, 1]} : vector<2x128xf32> to vector<2x32xf32>
    %112 = math.tanh %111 : vector<2x32xf32>
    %113 = arith.mulf %109, %92 : vector<2x32xf32>
    %114 = arith.mulf %108, %112 : vector<2x32xf32>
    %115 = arith.addf %113, %114 : vector<2x32xf32>
    %116 = math.tanh %115 : vector<2x32xf32>
    %117 = arith.mulf %110, %116 : vector<2x32xf32>
    %118 = arith.maximumf %95, %117 : vector<2x32xf32>
    %c0_27 = arith.constant 0 : index
    %c80 = arith.constant 80 : index
    %119 = vector.load %arg0[%c0_27, %c80] : memref<2x128xf32, #tpu.memory_space<vmem>>, vector<2x16xf32>
    %cst_28 = arith.constant dense<0.000000e+00> : vector<2x128xf32>
    %120 = tpu.matmul %119, %0, %cst_28 {dimension_numbers = #tpu.dot_dimension_numbers<[1], [0], [0], [1], [0, 0, 1, 1], [], []>} : vector<2x16xf32>, vector<16x128xf32>, vector<2x128xf32> -> vector<2x128xf32>
    %121 = vector.broadcast %2 : vector<1x128xf32> to vector<2x128xf32>
    %122 = arith.addf %120, %121 : vector<2x128xf32>
    %cst_29 = arith.constant dense<0.000000e+00> : vector<2x128xf32>
    %123 = tpu.matmul %117, %1, %cst_29 {dimension_numbers = #tpu.dot_dimension_numbers<[1], [0], [0], [1], [0, 0, 1, 1], [], []>} : vector<2x32xf32>, vector<32x128xf32>, vector<2x128xf32> -> vector<2x128xf32>
    %124 = arith.addf %122, %123 : vector<2x128xf32>
    %125 = vector.extract_strided_slice %124 {offsets = [0, 0], sizes = [2, 96], strides = [1, 1]} : vector<2x128xf32> to vector<2x96xf32>
    %126 = arith.negf %125 : vector<2x96xf32>
    %127 = math.exp %126 : vector<2x96xf32>
    %cst_30 = arith.constant 1.000000e+00 : f32
    %128 = vector.broadcast %cst_30 : f32 to vector<2x96xf32>
    %129 = arith.addf %128, %127 : vector<2x96xf32>
    %130 = arith.divf %128, %129 : vector<2x96xf32>
    %131 = vector.extract_strided_slice %130 {offsets = [0, 0], sizes = [2, 32], strides = [1, 1]} : vector<2x96xf32> to vector<2x32xf32>
    %132 = vector.extract_strided_slice %130 {offsets = [0, 32], sizes = [2, 32], strides = [1, 1]} : vector<2x96xf32> to vector<2x32xf32>
    %133 = vector.extract_strided_slice %130 {offsets = [0, 64], sizes = [2, 32], strides = [1, 1]} : vector<2x96xf32> to vector<2x32xf32>
    %134 = vector.extract_strided_slice %124 {offsets = [0, 96], sizes = [2, 32], strides = [1, 1]} : vector<2x128xf32> to vector<2x32xf32>
    %135 = math.tanh %134 : vector<2x32xf32>
    %136 = arith.mulf %132, %115 : vector<2x32xf32>
    %137 = arith.mulf %131, %135 : vector<2x32xf32>
    %138 = arith.addf %136, %137 : vector<2x32xf32>
    %139 = math.tanh %138 : vector<2x32xf32>
    %140 = arith.mulf %133, %139 : vector<2x32xf32>
    %141 = arith.maximumf %118, %140 : vector<2x32xf32>
    %c0_31 = arith.constant 0 : index
    %c96 = arith.constant 96 : index
    %142 = vector.load %arg0[%c0_31, %c96] : memref<2x128xf32, #tpu.memory_space<vmem>>, vector<2x16xf32>
    %cst_32 = arith.constant dense<0.000000e+00> : vector<2x128xf32>
    %143 = tpu.matmul %142, %0, %cst_32 {dimension_numbers = #tpu.dot_dimension_numbers<[1], [0], [0], [1], [0, 0, 1, 1], [], []>} : vector<2x16xf32>, vector<16x128xf32>, vector<2x128xf32> -> vector<2x128xf32>
    %144 = vector.broadcast %2 : vector<1x128xf32> to vector<2x128xf32>
    %145 = arith.addf %143, %144 : vector<2x128xf32>
    %cst_33 = arith.constant dense<0.000000e+00> : vector<2x128xf32>
    %146 = tpu.matmul %140, %1, %cst_33 {dimension_numbers = #tpu.dot_dimension_numbers<[1], [0], [0], [1], [0, 0, 1, 1], [], []>} : vector<2x32xf32>, vector<32x128xf32>, vector<2x128xf32> -> vector<2x128xf32>
    %147 = arith.addf %145, %146 : vector<2x128xf32>
    %148 = vector.extract_strided_slice %147 {offsets = [0, 0], sizes = [2, 96], strides = [1, 1]} : vector<2x128xf32> to vector<2x96xf32>
    %149 = arith.negf %148 : vector<2x96xf32>
    %150 = math.exp %149 : vector<2x96xf32>
    %cst_34 = arith.constant 1.000000e+00 : f32
    %151 = vector.broadcast %cst_34 : f32 to vector<2x96xf32>
    %152 = arith.addf %151, %150 : vector<2x96xf32>
    %153 = arith.divf %151, %152 : vector<2x96xf32>
    %154 = vector.extract_strided_slice %153 {offsets = [0, 0], sizes = [2, 32], strides = [1, 1]} : vector<2x96xf32> to vector<2x32xf32>
    %155 = vector.extract_strided_slice %153 {offsets = [0, 32], sizes = [2, 32], strides = [1, 1]} : vector<2x96xf32> to vector<2x32xf32>
    %156 = vector.extract_strided_slice %153 {offsets = [0, 64], sizes = [2, 32], strides = [1, 1]} : vector<2x96xf32> to vector<2x32xf32>
    %157 = vector.extract_strided_slice %147 {offsets = [0, 96], sizes = [2, 32], strides = [1, 1]} : vector<2x128xf32> to vector<2x32xf32>
    %158 = math.tanh %157 : vector<2x32xf32>
    %159 = arith.mulf %155, %138 : vector<2x32xf32>
    %160 = arith.mulf %154, %158 : vector<2x32xf32>
    %161 = arith.addf %159, %160 : vector<2x32xf32>
    %162 = math.tanh %161 : vector<2x32xf32>
    %163 = arith.mulf %156, %162 : vector<2x32xf32>
    %164 = arith.maximumf %141, %163 : vector<2x32xf32>
    %c0_35 = arith.constant 0 : index
    %c112 = arith.constant 112 : index
    %165 = vector.load %arg0[%c0_35, %c112] : memref<2x128xf32, #tpu.memory_space<vmem>>, vector<2x16xf32>
    %cst_36 = arith.constant dense<0.000000e+00> : vector<2x128xf32>
    %166 = tpu.matmul %165, %0, %cst_36 {dimension_numbers = #tpu.dot_dimension_numbers<[1], [0], [0], [1], [0, 0, 1, 1], [], []>} : vector<2x16xf32>, vector<16x128xf32>, vector<2x128xf32> -> vector<2x128xf32>
    %167 = vector.broadcast %2 : vector<1x128xf32> to vector<2x128xf32>
    %168 = arith.addf %166, %167 : vector<2x128xf32>
    %cst_37 = arith.constant dense<0.000000e+00> : vector<2x128xf32>
    %169 = tpu.matmul %163, %1, %cst_37 {dimension_numbers = #tpu.dot_dimension_numbers<[1], [0], [0], [1], [0, 0, 1, 1], [], []>} : vector<2x32xf32>, vector<32x128xf32>, vector<2x128xf32> -> vector<2x128xf32>
    %170 = arith.addf %168, %169 : vector<2x128xf32>
    %171 = vector.extract_strided_slice %170 {offsets = [0, 0], sizes = [2, 96], strides = [1, 1]} : vector<2x128xf32> to vector<2x96xf32>
    %172 = arith.negf %171 : vector<2x96xf32>
    %173 = math.exp %172 : vector<2x96xf32>
    %cst_38 = arith.constant 1.000000e+00 : f32
    %174 = vector.broadcast %cst_38 : f32 to vector<2x96xf32>
    %175 = arith.addf %174, %173 : vector<2x96xf32>
    %176 = arith.divf %174, %175 : vector<2x96xf32>
    %177 = vector.extract_strided_slice %176 {offsets = [0, 0], sizes = [2, 32], strides = [1, 1]} : vector<2x96xf32> to vector<2x32xf32>
    %178 = vector.extract_strided_slice %176 {offsets = [0, 32], sizes = [2, 32], strides = [1, 1]} : vector<2x96xf32> to vector<2x32xf32>
    %179 = vector.extract_strided_slice %176 {offsets = [0, 64], sizes = [2, 32], strides = [1, 1]} : vector<2x96xf32> to vector<2x32xf32>
    %180 = vector.extract_strided_slice %170 {offsets = [0, 96], sizes = [2, 32], strides = [1, 1]} : vector<2x128xf32> to vector<2x32xf32>
    %181 = math.tanh %180 : vector<2x32xf32>
    %182 = arith.mulf %178, %161 : vector<2x32xf32>
    %183 = arith.mulf %177, %181 : vector<2x32xf32>
    %184 = arith.addf %182, %183 : vector<2x32xf32>
    %185 = math.tanh %184 : vector<2x32xf32>
    %186 = arith.mulf %179, %185 : vector<2x32xf32>
    %187 = arith.maximumf %164, %186 : vector<2x32xf32>
    %c0_39 = arith.constant 0 : index
    %c0_40 = arith.constant 0 : index
    %188 = vector.load %arg4[%c0_39, %c0_40] : memref<32x128xf32, #tpu.memory_space<vmem>>, vector<32x128xf32>
    %cst_41 = arith.constant dense<0.000000e+00> : vector<2x128xf32>
    %189 = tpu.matmul %187, %188, %cst_41 {dimension_numbers = #tpu.dot_dimension_numbers<[1], [0], [0], [1], [0, 0, 1, 1], [], []>} : vector<2x32xf32>, vector<32x128xf32>, vector<2x128xf32> -> vector<2x128xf32>
    %c0_42 = arith.constant 0 : index
    %c0_43 = arith.constant 0 : index
    %190 = vector.load %arg6[%c0_42, %c0_43] : memref<1x128xf32, #tpu.memory_space<vmem>>, vector<1x128xf32>
    %191 = vector.broadcast %190 : vector<1x128xf32> to vector<2x128xf32>
    %192 = arith.addf %189, %191 : vector<2x128xf32>
    %c0_44 = arith.constant 0 : index
    %c0_45 = arith.constant 0 : index
    %193 = vector.load %arg5[%c0_44, %c0_45] : memref<32x128xf32, #tpu.memory_space<vmem>>, vector<32x128xf32>
    %c0_46 = arith.constant 0 : index
    %c0_47 = arith.constant 0 : index
    %194 = vector.load %arg7[%c0_46, %c0_47] : memref<32x16xf32, #tpu.memory_space<vmem>>, vector<32x16xf32>
    %c0_48 = arith.constant 0 : index
    %c0_49 = arith.constant 0 : index
    %195 = vector.load %arg8[%c0_48, %c0_49] : memref<1x16xf32, #tpu.memory_space<vmem>>, vector<1x16xf32>
    %cst_50 = arith.constant 0.000000e+00 : f32
    %196 = vector.broadcast %cst_50 : f32 to vector<2x32xf32>
    %cst_51 = arith.constant 0.000000e+00 : f32
    %197 = vector.broadcast %cst_51 : f32 to vector<2x32xf32>
    %cst_52 = arith.constant dense<0.000000e+00> : vector<2x128xf32>
    %198 = tpu.matmul %196, %193, %cst_52 {dimension_numbers = #tpu.dot_dimension_numbers<[1], [0], [0], [1], [0, 0, 1, 1], [], []>} : vector<2x32xf32>, vector<32x128xf32>, vector<2x128xf32> -> vector<2x128xf32>
    %199 = arith.addf %192, %198 : vector<2x128xf32>
    %200 = vector.extract_strided_slice %199 {offsets = [0, 0], sizes = [2, 96], strides = [1, 1]} : vector<2x128xf32> to vector<2x96xf32>
    %201 = arith.negf %200 : vector<2x96xf32>
    %202 = math.exp %201 : vector<2x96xf32>
    %cst_53 = arith.constant 1.000000e+00 : f32
    %203 = vector.broadcast %cst_53 : f32 to vector<2x96xf32>
    %204 = arith.addf %203, %202 : vector<2x96xf32>
    %205 = arith.divf %203, %204 : vector<2x96xf32>
    %206 = vector.extract_strided_slice %205 {offsets = [0, 0], sizes = [2, 32], strides = [1, 1]} : vector<2x96xf32> to vector<2x32xf32>
    %207 = vector.extract_strided_slice %205 {offsets = [0, 32], sizes = [2, 32], strides = [1, 1]} : vector<2x96xf32> to vector<2x32xf32>
    %208 = vector.extract_strided_slice %205 {offsets = [0, 64], sizes = [2, 32], strides = [1, 1]} : vector<2x96xf32> to vector<2x32xf32>
    %209 = vector.extract_strided_slice %199 {offsets = [0, 96], sizes = [2, 32], strides = [1, 1]} : vector<2x128xf32> to vector<2x32xf32>
    %210 = math.tanh %209 : vector<2x32xf32>
    %211 = arith.mulf %207, %197 : vector<2x32xf32>
    %212 = arith.mulf %206, %210 : vector<2x32xf32>
    %213 = arith.addf %211, %212 : vector<2x32xf32>
    %214 = math.tanh %213 : vector<2x32xf32>
    %215 = arith.mulf %208, %214 : vector<2x32xf32>
    %cst_54 = arith.constant dense<0.000000e+00> : vector<2x16xf32>
    %216 = tpu.matmul %215, %194, %cst_54 {dimension_numbers = #tpu.dot_dimension_numbers<[1], [0], [0], [1], [0, 0, 1, 1], [], []>} : vector<2x32xf32>, vector<32x16xf32>, vector<2x16xf32> -> vector<2x16xf32>
    %217 = vector.broadcast %195 : vector<1x16xf32> to vector<2x16xf32>
    %218 = arith.addf %216, %217 : vector<2x16xf32>
    %c0_55 = arith.constant 0 : index
    %c0_56 = arith.constant 0 : index
    %219 = vector.load %arg9[%c0_55, %c0_56] : memref<2x128xf32, #tpu.memory_space<vmem>>, vector<2x16xf32>
    tpu.vector_store %arg9[%c0_55, %c0_56], %218 {strides = array<i32>} : memref<2x128xf32, #tpu.memory_space<vmem>>, vector<2x16xf32>,
    %cst_57 = arith.constant dense<0.000000e+00> : vector<2x128xf32>
    %220 = tpu.matmul %215, %193, %cst_57 {dimension_numbers = #tpu.dot_dimension_numbers<[1], [0], [0], [1], [0, 0, 1, 1], [], []>} : vector<2x32xf32>, vector<32x128xf32>, vector<2x128xf32> -> vector<2x128xf32>
    %221 = arith.addf %192, %220 : vector<2x128xf32>
    %222 = vector.extract_strided_slice %221 {offsets = [0, 0], sizes = [2, 96], strides = [1, 1]} : vector<2x128xf32> to vector<2x96xf32>
    %223 = arith.negf %222 : vector<2x96xf32>
    %224 = math.exp %223 : vector<2x96xf32>
    %cst_58 = arith.constant 1.000000e+00 : f32
    %225 = vector.broadcast %cst_58 : f32 to vector<2x96xf32>
    %226 = arith.addf %225, %224 : vector<2x96xf32>
    %227 = arith.divf %225, %226 : vector<2x96xf32>
    %228 = vector.extract_strided_slice %227 {offsets = [0, 0], sizes = [2, 32], strides = [1, 1]} : vector<2x96xf32> to vector<2x32xf32>
    %229 = vector.extract_strided_slice %227 {offsets = [0, 32], sizes = [2, 32], strides = [1, 1]} : vector<2x96xf32> to vector<2x32xf32>
    %230 = vector.extract_strided_slice %227 {offsets = [0, 64], sizes = [2, 32], strides = [1, 1]} : vector<2x96xf32> to vector<2x32xf32>
    %231 = vector.extract_strided_slice %221 {offsets = [0, 96], sizes = [2, 32], strides = [1, 1]} : vector<2x128xf32> to vector<2x32xf32>
    %232 = math.tanh %231 : vector<2x32xf32>
    %233 = arith.mulf %229, %213 : vector<2x32xf32>
    %234 = arith.mulf %228, %232 : vector<2x32xf32>
    %235 = arith.addf %233, %234 : vector<2x32xf32>
    %236 = math.tanh %235 : vector<2x32xf32>
    %237 = arith.mulf %230, %236 : vector<2x32xf32>
    %cst_59 = arith.constant dense<0.000000e+00> : vector<2x16xf32>
    %238 = tpu.matmul %237, %194, %cst_59 {dimension_numbers = #tpu.dot_dimension_numbers<[1], [0], [0], [1], [0, 0, 1, 1], [], []>} : vector<2x32xf32>, vector<32x16xf32>, vector<2x16xf32> -> vector<2x16xf32>
    %239 = vector.broadcast %195 : vector<1x16xf32> to vector<2x16xf32>
    %240 = arith.addf %238, %239 : vector<2x16xf32>
    %c0_60 = arith.constant 0 : index
    %c16_61 = arith.constant 16 : index
    %241 = vector.load %arg9[%c0_60, %c16_61] : memref<2x128xf32, #tpu.memory_space<vmem>>, vector<2x16xf32>
    tpu.vector_store %arg9[%c0_60, %c16_61], %240 {strides = array<i32>} : memref<2x128xf32, #tpu.memory_space<vmem>>, vector<2x16xf32>,
    %cst_62 = arith.constant dense<0.000000e+00> : vector<2x128xf32>
    %242 = tpu.matmul %237, %193, %cst_62 {dimension_numbers = #tpu.dot_dimension_numbers<[1], [0], [0], [1], [0, 0, 1, 1], [], []>} : vector<2x32xf32>, vector<32x128xf32>, vector<2x128xf32> -> vector<2x128xf32>
    %243 = arith.addf %192, %242 : vector<2x128xf32>
    %244 = vector.extract_strided_slice %243 {offsets = [0, 0], sizes = [2, 96], strides = [1, 1]} : vector<2x128xf32> to vector<2x96xf32>
    %245 = arith.negf %244 : vector<2x96xf32>
    %246 = math.exp %245 : vector<2x96xf32>
    %cst_63 = arith.constant 1.000000e+00 : f32
    %247 = vector.broadcast %cst_63 : f32 to vector<2x96xf32>
    %248 = arith.addf %247, %246 : vector<2x96xf32>
    %249 = arith.divf %247, %248 : vector<2x96xf32>
    %250 = vector.extract_strided_slice %249 {offsets = [0, 0], sizes = [2, 32], strides = [1, 1]} : vector<2x96xf32> to vector<2x32xf32>
    %251 = vector.extract_strided_slice %249 {offsets = [0, 32], sizes = [2, 32], strides = [1, 1]} : vector<2x96xf32> to vector<2x32xf32>
    %252 = vector.extract_strided_slice %249 {offsets = [0, 64], sizes = [2, 32], strides = [1, 1]} : vector<2x96xf32> to vector<2x32xf32>
    %253 = vector.extract_strided_slice %243 {offsets = [0, 96], sizes = [2, 32], strides = [1, 1]} : vector<2x128xf32> to vector<2x32xf32>
    %254 = math.tanh %253 : vector<2x32xf32>
    %255 = arith.mulf %251, %235 : vector<2x32xf32>
    %256 = arith.mulf %250, %254 : vector<2x32xf32>
    %257 = arith.addf %255, %256 : vector<2x32xf32>
    %258 = math.tanh %257 : vector<2x32xf32>
    %259 = arith.mulf %252, %258 : vector<2x32xf32>
    %cst_64 = arith.constant dense<0.000000e+00> : vector<2x16xf32>
    %260 = tpu.matmul %259, %194, %cst_64 {dimension_numbers = #tpu.dot_dimension_numbers<[1], [0], [0], [1], [0, 0, 1, 1], [], []>} : vector<2x32xf32>, vector<32x16xf32>, vector<2x16xf32> -> vector<2x16xf32>
    %261 = vector.broadcast %195 : vector<1x16xf32> to vector<2x16xf32>
    %262 = arith.addf %260, %261 : vector<2x16xf32>
    %c0_65 = arith.constant 0 : index
    %c32_66 = arith.constant 32 : index
    %263 = vector.load %arg9[%c0_65, %c32_66] : memref<2x128xf32, #tpu.memory_space<vmem>>, vector<2x16xf32>
    tpu.vector_store %arg9[%c0_65, %c32_66], %262 {strides = array<i32>} : memref<2x128xf32, #tpu.memory_space<vmem>>, vector<2x16xf32>,
    %cst_67 = arith.constant dense<0.000000e+00> : vector<2x128xf32>
    %264 = tpu.matmul %259, %193, %cst_67 {dimension_numbers = #tpu.dot_dimension_numbers<[1], [0], [0], [1], [0, 0, 1, 1], [], []>} : vector<2x32xf32>, vector<32x128xf32>, vector<2x128xf32> -> vector<2x128xf32>
    %265 = arith.addf %192, %264 : vector<2x128xf32>
    %266 = vector.extract_strided_slice %265 {offsets = [0, 0], sizes = [2, 96], strides = [1, 1]} : vector<2x128xf32> to vector<2x96xf32>
    %267 = arith.negf %266 : vector<2x96xf32>
    %268 = math.exp %267 : vector<2x96xf32>
    %cst_68 = arith.constant 1.000000e+00 : f32
    %269 = vector.broadcast %cst_68 : f32 to vector<2x96xf32>
    %270 = arith.addf %269, %268 : vector<2x96xf32>
    %271 = arith.divf %269, %270 : vector<2x96xf32>
    %272 = vector.extract_strided_slice %271 {offsets = [0, 0], sizes = [2, 32], strides = [1, 1]} : vector<2x96xf32> to vector<2x32xf32>
    %273 = vector.extract_strided_slice %271 {offsets = [0, 32], sizes = [2, 32], strides = [1, 1]} : vector<2x96xf32> to vector<2x32xf32>
    %274 = vector.extract_strided_slice %271 {offsets = [0, 64], sizes = [2, 32], strides = [1, 1]} : vector<2x96xf32> to vector<2x32xf32>
    %275 = vector.extract_strided_slice %265 {offsets = [0, 96], sizes = [2, 32], strides = [1, 1]} : vector<2x128xf32> to vector<2x32xf32>
    %276 = math.tanh %275 : vector<2x32xf32>
    %277 = arith.mulf %273, %257 : vector<2x32xf32>
    %278 = arith.mulf %272, %276 : vector<2x32xf32>
    %279 = arith.addf %277, %278 : vector<2x32xf32>
    %280 = math.tanh %279 : vector<2x32xf32>
    %281 = arith.mulf %274, %280 : vector<2x32xf32>
    %cst_69 = arith.constant dense<0.000000e+00> : vector<2x16xf32>
    %282 = tpu.matmul %281, %194, %cst_69 {dimension_numbers = #tpu.dot_dimension_numbers<[1], [0], [0], [1], [0, 0, 1, 1], [], []>} : vector<2x32xf32>, vector<32x16xf32>, vector<2x16xf32> -> vector<2x16xf32>
    %283 = vector.broadcast %195 : vector<1x16xf32> to vector<2x16xf32>
    %284 = arith.addf %282, %283 : vector<2x16xf32>
    %c0_70 = arith.constant 0 : index
    %c48_71 = arith.constant 48 : index
    %285 = vector.load %arg9[%c0_70, %c48_71] : memref<2x128xf32, #tpu.memory_space<vmem>>, vector<2x16xf32>
    tpu.vector_store %arg9[%c0_70, %c48_71], %284 {strides = array<i32>} : memref<2x128xf32, #tpu.memory_space<vmem>>, vector<2x16xf32>,
    %cst_72 = arith.constant dense<0.000000e+00> : vector<2x128xf32>
    %286 = tpu.matmul %281, %193, %cst_72 {dimension_numbers = #tpu.dot_dimension_numbers<[1], [0], [0], [1], [0, 0, 1, 1], [], []>} : vector<2x32xf32>, vector<32x128xf32>, vector<2x128xf32> -> vector<2x128xf32>
    %287 = arith.addf %192, %286 : vector<2x128xf32>
    %288 = vector.extract_strided_slice %287 {offsets = [0, 0], sizes = [2, 96], strides = [1, 1]} : vector<2x128xf32> to vector<2x96xf32>
    %289 = arith.negf %288 : vector<2x96xf32>
    %290 = math.exp %289 : vector<2x96xf32>
    %cst_73 = arith.constant 1.000000e+00 : f32
    %291 = vector.broadcast %cst_73 : f32 to vector<2x96xf32>
    %292 = arith.addf %291, %290 : vector<2x96xf32>
    %293 = arith.divf %291, %292 : vector<2x96xf32>
    %294 = vector.extract_strided_slice %293 {offsets = [0, 0], sizes = [2, 32], strides = [1, 1]} : vector<2x96xf32> to vector<2x32xf32>
    %295 = vector.extract_strided_slice %293 {offsets = [0, 32], sizes = [2, 32], strides = [1, 1]} : vector<2x96xf32> to vector<2x32xf32>
    %296 = vector.extract_strided_slice %293 {offsets = [0, 64], sizes = [2, 32], strides = [1, 1]} : vector<2x96xf32> to vector<2x32xf32>
    %297 = vector.extract_strided_slice %287 {offsets = [0, 96], sizes = [2, 32], strides = [1, 1]} : vector<2x128xf32> to vector<2x32xf32>
    %298 = math.tanh %297 : vector<2x32xf32>
    %299 = arith.mulf %295, %279 : vector<2x32xf32>
    %300 = arith.mulf %294, %298 : vector<2x32xf32>
    %301 = arith.addf %299, %300 : vector<2x32xf32>
    %302 = math.tanh %301 : vector<2x32xf32>
    %303 = arith.mulf %296, %302 : vector<2x32xf32>
    %cst_74 = arith.constant dense<0.000000e+00> : vector<2x16xf32>
    %304 = tpu.matmul %303, %194, %cst_74 {dimension_numbers = #tpu.dot_dimension_numbers<[1], [0], [0], [1], [0, 0, 1, 1], [], []>} : vector<2x32xf32>, vector<32x16xf32>, vector<2x16xf32> -> vector<2x16xf32>
    %305 = vector.broadcast %195 : vector<1x16xf32> to vector<2x16xf32>
    %306 = arith.addf %304, %305 : vector<2x16xf32>
    %c0_75 = arith.constant 0 : index
    %c64_76 = arith.constant 64 : index
    %307 = vector.load %arg9[%c0_75, %c64_76] : memref<2x128xf32, #tpu.memory_space<vmem>>, vector<2x16xf32>
    tpu.vector_store %arg9[%c0_75, %c64_76], %306 {strides = array<i32>} : memref<2x128xf32, #tpu.memory_space<vmem>>, vector<2x16xf32>,
    %cst_77 = arith.constant dense<0.000000e+00> : vector<2x128xf32>
    %308 = tpu.matmul %303, %193, %cst_77 {dimension_numbers = #tpu.dot_dimension_numbers<[1], [0], [0], [1], [0, 0, 1, 1], [], []>} : vector<2x32xf32>, vector<32x128xf32>, vector<2x128xf32> -> vector<2x128xf32>
    %309 = arith.addf %192, %308 : vector<2x128xf32>
    %310 = vector.extract_strided_slice %309 {offsets = [0, 0], sizes = [2, 96], strides = [1, 1]} : vector<2x128xf32> to vector<2x96xf32>
    %311 = arith.negf %310 : vector<2x96xf32>
    %312 = math.exp %311 : vector<2x96xf32>
    %cst_78 = arith.constant 1.000000e+00 : f32
    %313 = vector.broadcast %cst_78 : f32 to vector<2x96xf32>
    %314 = arith.addf %313, %312 : vector<2x96xf32>
    %315 = arith.divf %313, %314 : vector<2x96xf32>
    %316 = vector.extract_strided_slice %315 {offsets = [0, 0], sizes = [2, 32], strides = [1, 1]} : vector<2x96xf32> to vector<2x32xf32>
    %317 = vector.extract_strided_slice %315 {offsets = [0, 32], sizes = [2, 32], strides = [1, 1]} : vector<2x96xf32> to vector<2x32xf32>
    %318 = vector.extract_strided_slice %315 {offsets = [0, 64], sizes = [2, 32], strides = [1, 1]} : vector<2x96xf32> to vector<2x32xf32>
    %319 = vector.extract_strided_slice %309 {offsets = [0, 96], sizes = [2, 32], strides = [1, 1]} : vector<2x128xf32> to vector<2x32xf32>
    %320 = math.tanh %319 : vector<2x32xf32>
    %321 = arith.mulf %317, %301 : vector<2x32xf32>
    %322 = arith.mulf %316, %320 : vector<2x32xf32>
    %323 = arith.addf %321, %322 : vector<2x32xf32>
    %324 = math.tanh %323 : vector<2x32xf32>
    %325 = arith.mulf %318, %324 : vector<2x32xf32>
    %cst_79 = arith.constant dense<0.000000e+00> : vector<2x16xf32>
    %326 = tpu.matmul %325, %194, %cst_79 {dimension_numbers = #tpu.dot_dimension_numbers<[1], [0], [0], [1], [0, 0, 1, 1], [], []>} : vector<2x32xf32>, vector<32x16xf32>, vector<2x16xf32> -> vector<2x16xf32>
    %327 = vector.broadcast %195 : vector<1x16xf32> to vector<2x16xf32>
    %328 = arith.addf %326, %327 : vector<2x16xf32>
    %c0_80 = arith.constant 0 : index
    %c80_81 = arith.constant 80 : index
    %329 = vector.load %arg9[%c0_80, %c80_81] : memref<2x128xf32, #tpu.memory_space<vmem>>, vector<2x16xf32>
    tpu.vector_store %arg9[%c0_80, %c80_81], %328 {strides = array<i32>} : memref<2x128xf32, #tpu.memory_space<vmem>>, vector<2x16xf32>,
    %cst_82 = arith.constant dense<0.000000e+00> : vector<2x128xf32>
    %330 = tpu.matmul %325, %193, %cst_82 {dimension_numbers = #tpu.dot_dimension_numbers<[1], [0], [0], [1], [0, 0, 1, 1], [], []>} : vector<2x32xf32>, vector<32x128xf32>, vector<2x128xf32> -> vector<2x128xf32>
    %331 = arith.addf %192, %330 : vector<2x128xf32>
    %332 = vector.extract_strided_slice %331 {offsets = [0, 0], sizes = [2, 96], strides = [1, 1]} : vector<2x128xf32> to vector<2x96xf32>
    %333 = arith.negf %332 : vector<2x96xf32>
    %334 = math.exp %333 : vector<2x96xf32>
    %cst_83 = arith.constant 1.000000e+00 : f32
    %335 = vector.broadcast %cst_83 : f32 to vector<2x96xf32>
    %336 = arith.addf %335, %334 : vector<2x96xf32>
    %337 = arith.divf %335, %336 : vector<2x96xf32>
    %338 = vector.extract_strided_slice %337 {offsets = [0, 0], sizes = [2, 32], strides = [1, 1]} : vector<2x96xf32> to vector<2x32xf32>
    %339 = vector.extract_strided_slice %337 {offsets = [0, 32], sizes = [2, 32], strides = [1, 1]} : vector<2x96xf32> to vector<2x32xf32>
    %340 = vector.extract_strided_slice %337 {offsets = [0, 64], sizes = [2, 32], strides = [1, 1]} : vector<2x96xf32> to vector<2x32xf32>
    %341 = vector.extract_strided_slice %331 {offsets = [0, 96], sizes = [2, 32], strides = [1, 1]} : vector<2x128xf32> to vector<2x32xf32>
    %342 = math.tanh %341 : vector<2x32xf32>
    %343 = arith.mulf %339, %323 : vector<2x32xf32>
    %344 = arith.mulf %338, %342 : vector<2x32xf32>
    %345 = arith.addf %343, %344 : vector<2x32xf32>
    %346 = math.tanh %345 : vector<2x32xf32>
    %347 = arith.mulf %340, %346 : vector<2x32xf32>
    %cst_84 = arith.constant dense<0.000000e+00> : vector<2x16xf32>
    %348 = tpu.matmul %347, %194, %cst_84 {dimension_numbers = #tpu.dot_dimension_numbers<[1], [0], [0], [1], [0, 0, 1, 1], [], []>} : vector<2x32xf32>, vector<32x16xf32>, vector<2x16xf32> -> vector<2x16xf32>
    %349 = vector.broadcast %195 : vector<1x16xf32> to vector<2x16xf32>
    %350 = arith.addf %348, %349 : vector<2x16xf32>
    %c0_85 = arith.constant 0 : index
    %c96_86 = arith.constant 96 : index
    %351 = vector.load %arg9[%c0_85, %c96_86] : memref<2x128xf32, #tpu.memory_space<vmem>>, vector<2x16xf32>
    tpu.vector_store %arg9[%c0_85, %c96_86], %350 {strides = array<i32>} : memref<2x128xf32, #tpu.memory_space<vmem>>, vector<2x16xf32>,
    %cst_87 = arith.constant dense<0.000000e+00> : vector<2x128xf32>
    %352 = tpu.matmul %347, %193, %cst_87 {dimension_numbers = #tpu.dot_dimension_numbers<[1], [0], [0], [1], [0, 0, 1, 1], [], []>} : vector<2x32xf32>, vector<32x128xf32>, vector<2x128xf32> -> vector<2x128xf32>
    %353 = arith.addf %192, %352 : vector<2x128xf32>
    %354 = vector.extract_strided_slice %353 {offsets = [0, 0], sizes = [2, 96], strides = [1, 1]} : vector<2x128xf32> to vector<2x96xf32>
    %355 = arith.negf %354 : vector<2x96xf32>
    %356 = math.exp %355 : vector<2x96xf32>
    %cst_88 = arith.constant 1.000000e+00 : f32
    %357 = vector.broadcast %cst_88 : f32 to vector<2x96xf32>
    %358 = arith.addf %357, %356 : vector<2x96xf32>
    %359 = arith.divf %357, %358 : vector<2x96xf32>
    %360 = vector.extract_strided_slice %359 {offsets = [0, 0], sizes = [2, 32], strides = [1, 1]} : vector<2x96xf32> to vector<2x32xf32>
    %361 = vector.extract_strided_slice %359 {offsets = [0, 32], sizes = [2, 32], strides = [1, 1]} : vector<2x96xf32> to vector<2x32xf32>
    %362 = vector.extract_strided_slice %359 {offsets = [0, 64], sizes = [2, 32], strides = [1, 1]} : vector<2x96xf32> to vector<2x32xf32>
    %363 = vector.extract_strided_slice %353 {offsets = [0, 96], sizes = [2, 32], strides = [1, 1]} : vector<2x128xf32> to vector<2x32xf32>
    %364 = math.tanh %363 : vector<2x32xf32>
    %365 = arith.mulf %361, %345 : vector<2x32xf32>
    %366 = arith.mulf %360, %364 : vector<2x32xf32>
    %367 = arith.addf %365, %366 : vector<2x32xf32>
    %368 = math.tanh %367 : vector<2x32xf32>
    %369 = arith.mulf %362, %368 : vector<2x32xf32>
    %cst_89 = arith.constant dense<0.000000e+00> : vector<2x16xf32>
    %370 = tpu.matmul %369, %194, %cst_89 {dimension_numbers = #tpu.dot_dimension_numbers<[1], [0], [0], [1], [0, 0, 1, 1], [], []>} : vector<2x32xf32>, vector<32x16xf32>, vector<2x16xf32> -> vector<2x16xf32>
    %371 = vector.broadcast %195 : vector<1x16xf32> to vector<2x16xf32>
    %372 = arith.addf %370, %371 : vector<2x16xf32>
    %c0_90 = arith.constant 0 : index
    %c112_91 = arith.constant 112 : index
    %373 = vector.load %arg9[%c0_90, %c112_91] : memref<2x128xf32, #tpu.memory_space<vmem>>, vector<2x16xf32>
    tpu.vector_store %arg9[%c0_90, %c112_91], %372 {strides = array<i32>} : memref<2x128xf32, #tpu.memory_space<vmem>>, vector<2x16xf32>,
    return
  }
}

</mosaic_0001>

<llo_original>
// kernel: lstm_autoencoder_forward.1
$region0: #{lstm_autoencoder_forward.1}
  #allocation0 [shape = 'u32[]', space=smem, size = 0x4, offset = 0x4, fixed_abs, tag = 'smem constant byte address 0x4 - core index']
  #allocation1 [shape = 'u32[72,128]{1,0:T(1,128)}', space=vmem, size = 0x9000, scoped, tag = 'internal scratch']
  %s0 = inlined_call_operand.vmem [shape: f32[2,128], index: 0, kind: input, shape index: {}]
  %s1 = inlined_call_operand.vmem [shape: f32[16,128], index: 1, kind: input, shape index: {}]
  %s2 = inlined_call_operand.vmem [shape: f32[32,128], index: 2, kind: input, shape index: {}]
  %s3 = inlined_call_operand.vmem [shape: f32[1,128], index: 3, kind: input, shape index: {}]
  %s4 = inlined_call_operand.hbm [shape: f32[32,128], index: 4, kind: input, shape index: {}]
  %s5 = inlined_call_operand.hbm [shape: f32[32,128], index: 5, kind: input, shape index: {}]
  %s6 = inlined_call_operand.vmem [shape: f32[1,128], index: 6, kind: input, shape index: {}]
  %s7 = inlined_call_operand.vmem [shape: f32[32,16], index: 7, kind: input, shape index: {}]
  %s8 = inlined_call_operand.vmem [shape: f32[1,16], index: 8, kind: input, shape index: {}]
  %s9 = inlined_call_operand.vmem [shape: f32[2,128], index: 9, kind: output, shape index: {}]
  %s10 = sld [smem:[#allocation0]]
  $region54: #{lstm_autoencoder_forward.1} parent=0
    _
  %s12 = ssub.s32 1, %s10
  %s13 = scalar_select 0, %s12, %s10
  $region1: #{lstm_autoencoder_forward.1} parent=0
    #allocation2 [shape = 'u8[16384]{0}', space=vmem, size = 0x4000, scoped, tag = 'input window, operand 4, single buffered']
    #allocation3 [shape = 's32[1]{0}', space=sflag, size = 0x4, scoped, tag = 'scoped memory for lstm_autoencoder_forward.1']
    #allocation4 [shape = 'u8[16384]{0}', space=vmem, size = 0x4000, scoped, tag = 'input window, operand 5, single buffered']
    #allocation5 [shape = 's32[1]{0}', space=sflag, size = 0x4, scoped, tag = 'scoped memory for lstm_autoencoder_forward.1']
    %14 = vsyncpa [#allocation3], 0
    %15 = vsyncpa [#allocation5], 0
    // Predicated region
    $region2: #{lstm_autoencoder_forward.1} parent=1 // pred_check
      _
    $region3: #{lstm_autoencoder_forward.1} parent=1 // pred_check_branch
      %17 = sbr.rel (0) target = $region5
    $region4: #{lstm_autoencoder_forward.1} parent=1 // pred_region
      _
    $region5: #{lstm_autoencoder_forward.1} parent=1 // pred_fallthru
      _
    // Predicated region
    $region6: #{lstm_autoencoder_forward.1} parent=1 // pred_check
      _
    $region7: #{lstm_autoencoder_forward.1} parent=1 // pred_check_branch
      %19 = sbr.rel (0) target = $region9
    $region8: #{lstm_autoencoder_forward.1} parent=1 // pred_region
      _
    $region9: #{lstm_autoencoder_forward.1} parent=1 // pred_fallthru
      _
    // Predicated region
    $region10: #{lstm_autoencoder_forward.1} parent=1 // pred_check
      _
    $region11: #{lstm_autoencoder_forward.1} parent=1 // pred_check_branch
      %21 = sbr.rel (0) target = $region13
    $region12: #{lstm_autoencoder_forward.1} parent=1 // pred_region
      _
    $region13: #{lstm_autoencoder_forward.1} parent=1 // pred_fallthru
      _
    // Predicated region
    $region14: #{lstm_autoencoder_forward.1} parent=1 // pred_check
      _
    $region15: #{lstm_autoencoder_forward.1} parent=1 // pred_check_branch
      %23 = sbr.rel (0) target = $region17
    $region16: #{lstm_autoencoder_forward.1} parent=1 // pred_region
      _
    $region17: #{lstm_autoencoder_forward.1} parent=1 // pred_fallthru
      _
    // Predicated region
    $region18: #{lstm_autoencoder_forward.1} parent=1 // pred_check
      _
    $region19: #{lstm_autoencoder_forward.1} parent=1 // pred_check_branch
      %25 = sbr.rel (0) target = $region21
    $region20: #{lstm_autoencoder_forward.1} parent=1 // pred_region
      %27 = vsyncadd [#allocation3], 0
      %s28 = sshll.u32 %s4, 4
      %s29 = int_to_ptr.hbm [resolvable:$true] %s28
      %s30 = sshll.u32 [#allocation2], 4
      %s31 = int_to_ptr.vmem [resolvable:$true] %s30
      %36 = dma.hbm_to_vmem [thread:$0]  %s29, 512, %s31, [#allocation3], 128, 128, 8
    $region21: #{lstm_autoencoder_forward.1} parent=1 // pred_fallthru
      _
    // Predicated region
    $region22: #{lstm_autoencoder_forward.1} parent=1 // pred_check
      _
    $region23: #{lstm_autoencoder_forward.1} parent=1 // pred_check_branch
      %38 = sbr.rel (0) target = $region25
    $region24: #{lstm_autoencoder_forward.1} parent=1 // pred_region
      %40 = vsyncadd [#allocation5], 0
      %s41 = sshll.u32 %s5, 4
      %s42 = int_to_ptr.hbm [resolvable:$true] %s41
      %s43 = sshll.u32 [#allocation4], 4
      %s44 = int_to_ptr.vmem [resolvable:$true] %s43
      %49 = dma.hbm_to_vmem [thread:$0]  %s42, 512, %s44, [#allocation5], 128, 128, 8
    $region25: #{lstm_autoencoder_forward.1} parent=1 // pred_fallthru
      _
    // Predicated region
    $region26: #{lstm_autoencoder_forward.1} parent=1 // pred_check
      _
    $region27: #{lstm_autoencoder_forward.1} parent=1 // pred_check_branch
      %51 = sbr.rel (0) target = $region29
    $region28: #{lstm_autoencoder_forward.1} parent=1 // pred_region
      _
    $region29: #{lstm_autoencoder_forward.1} parent=1 // pred_fallthru
      _
    // Predicated region
    $region30: #{lstm_autoencoder_forward.1} parent=1 // pred_check
      _
    $region31: #{lstm_autoencoder_forward.1} parent=1 // pred_check_branch
      %53 = sbr.rel (0) target = $region33
    $region32: #{lstm_autoencoder_forward.1} parent=1 // pred_region
      _
    $region33: #{lstm_autoencoder_forward.1} parent=1 // pred_fallthru
      _
    // Predicated region
    $region34: #{lstm_autoencoder_forward.1} parent=1 // pred_check
      _
    $region35: #{lstm_autoencoder_forward.1} parent=1 // pred_check_branch
      %55 = sbr.rel (0) target = $region37
    $region36: #{lstm_autoencoder_forward.1} parent=1 // pred_region
      _
    $region37: #{lstm_autoencoder_forward.1} parent=1 // pred_fallthru
      _
    // Predicated region
    $region38: #{lstm_autoencoder_forward.1} parent=1 // pred_check
      _
    $region39: #{lstm_autoencoder_forward.1} parent=1 // pred_check_branch
      %57 = sbr.rel (0) target = $region41
    $region40: #{lstm_autoencoder_forward.1} parent=1 // pred_region
      %59 = dma.done [#allocation3], 512
    $region41: #{lstm_autoencoder_forward.1} parent=1 // pred_fallthru
      _
    // Predicated region
    $region42: #{lstm_autoencoder_forward.1} parent=1 // pred_check
      _
    $region43: #{lstm_autoencoder_forward.1} parent=1 // pred_check_branch
      %61 = sbr.rel (0) target = $region45
    $region44: #{lstm_autoencoder_forward.1} parent=1 // pred_region
      %63 = dma.done [#allocation5], 512
    $region45: #{lstm_autoencoder_forward.1} parent=1 // pred_fallthru
      _
    %v64 = vld [vmem:[%s1] sm:$0xff]
    %v65 = vld [vmem:[%s1 + $0x8] sm:$0xff]
    %v66 = vld [vmem:[%s2] sm:$0xff]
    %v67 = vld [vmem:[%s2 + $0x8] sm:$0xff]
    %v68 = vld [vmem:[%s2 + $0x10] sm:$0xff]
    %v69 = vld [vmem:[%s2 + $0x18] sm:$0xff]
    %v70 = vld [vmem:[%s3] sm:$0x1]
    %v71 = vld [vmem:[%s0] sm:$0x3]
    %v73 = vperm.slane %v70, 0
    %vm75 = vcmask 130048
    %v77 = vsel %vm75, %v71, 0
    %79 = vmatpush.msra.mxu0 0.0
    %80 = vmatpush.msra.mxu0 0.0
    %81 = vmatpush.msra.mxu0 0.0
    %82 = vmatpush.msra.mxu0 0.0
    %83 = vmatpush.msra.mxu0 0.0
    %84 = vmatpush.msra.mxu0 0.0
    %85 = vmatpush.msra.mxu0 0.0
    %86 = vmatpush.msra.mxu0 0.0
    %87 = vmatpush.msra.mxu0 0.0
    %88 = vmatpush.msra.mxu0 0.0
    %89 = vmatpush.msra.mxu0 0.0
    %90 = vmatpush.msra.mxu0 0.0
    %91 = vmatpush.msra.mxu0 0.0
    %92 = vmatpush.msra.mxu0 0.0
    %93 = vmatpush.msra.mxu0 %v65
    %94 = vmatpush.msra.mxu0 %v64
    %95 = vmatmul.f32.gmra.mxu0 %v77
    %v96 = vpop.f32.mrf.mxu0
    %v97 = vadd.f32 %v73, %v96
    %98 = vdwg.mxu0
    %vm99 = vcmask 261120
    %v101 = vsel %vm99, 0.0, 0
    %103 = vmatpush.msra.mxu0 0.0
    %104 = vmatpush.msra.mxu0 0.0
    %105 = vmatpush.msra.mxu0 0.0
    %106 = vmatpush.msra.mxu0 0.0
    %107 = vmatpush.msra.mxu0 0.0
    %108 = vmatpush.msra.mxu0 0.0
    %109 = vmatpush.msra.mxu0 0.0
    %110 = vmatpush.msra.mxu0 0.0
    %111 = vmatpush.msra.mxu0 0.0
    %112 = vmatpush.msra.mxu0 0.0
    %113 = vmatpush.msra.mxu0 0.0
    %114 = vmatpush.msra.mxu0 0.0
    %115 = vmatpush.msra.mxu0 %v69
    %116 = vmatpush.msra.mxu0 %v68
    %117 = vmatpush.msra.mxu0 %v67
    %118 = vmatpush.msra.mxu0 %v66
    %119 = vmatmul.f32.gmra.mxu0 %v101
    %v120 = vpop.f32.mrf.mxu0
    %v121 = vadd.f32 0.0, %v120
    %122 = vdwg.mxu0
    %v123 = vadd.f32 %v97, %v121
    %v124 = vxor.u32 %v123, 2147483648
    %v125 = vmul.f32 %v124, 1.442695
    %v126 = vpow.pop %v125
    %v127 = vadd.f32 %v126, 1.0
    %v128 = vrcp.pop %v127
    %v129 = vmul.f32 %v127, %v128
    %v130 = vsub.f32 1.0, %v129
    %v131 = vmul.f32 %v128, %v130
    %v132 = vadd.f32 %v128, %v131
    %vm133 = vweird.f32 %v127
    %vm134 = vweird.f32 %v128
    %vm135 = vmor %vm133, %vm134
    %v136 = vsel %vm135, %v128, %v132
    %v137 = vand.u32 2147483647, %v127
    %vm138 = vcmp.eq.f32.partialorder %v137, 8.507059e+37
    %v139 = vand.u32 %v127, 2147483648
    %v140 = vor.u32 1.1754944e-38, %v139
    %v141 = vsel %vm138, %v140, %v136
    %v142 = vmul.f32 1.0, %v141
    %v143 = vtanh.pop %v123
    %v144 = vmul.f32 %v142, 0.0
    %146 = vrot.lane.b32.xlu0 %v143, 32
    %v147 = vpop.permute.xlu0 %146
    %v149 = vmul.f32 %v142, %v147
    %151 = vrot.lane.b32.xlu0 %v149, 32
    %v152 = vpop.permute.xlu0 %151
    %v154 = vadd.f32 %v144, %v152
    %v155 = vtanh.pop %v154
    %157 = vrot.lane.b32.xlu0 %v155, 32
    %v158 = vpop.permute.xlu0 %157
    %v160 = vmul.f32 %v142, %v158
    %161 = vrot.lane.b32.xlu0 %v71, 112
    %v162 = vpop.permute.xlu0 %161
    %v163 = vsel %vm75, %v162, 0
    %165 = vmatpush.msra.mxu0 0.0
    %166 = vmatpush.msra.mxu0 0.0
    %167 = vmatpush.msra.mxu0 0.0
    %168 = vmatpush.msra.mxu0 0.0
    %169 = vmatpush.msra.mxu0 0.0
    %170 = vmatpush.msra.mxu0 0.0
    %171 = vmatpush.msra.mxu0 0.0
    %172 = vmatpush.msra.mxu0 0.0
    %173 = vmatpush.msra.mxu0 0.0
    %174 = vmatpush.msra.mxu0 0.0
    %175 = vmatpush.msra.mxu0 0.0
    %176 = vmatpush.msra.mxu0 0.0
    %177 = vmatpush.msra.mxu0 0.0
    %178 = vmatpush.msra.mxu0 0.0
    %179 = vmatpush.msra.mxu0 %v65
    %180 = vmatpush.msra.mxu0 %v64
    %181 = vmatmul.f32.gmra.mxu0 %v163
    %v182 = vpop.f32.mrf.mxu0
    %v183 = vadd.f32 %v73, %v182
    %184 = vdwg.mxu0
    %186 = vrot.lane.b32.xlu0 %v160, 64
    %v187 = vpop.permute.xlu0 %186
    %v188 = vsel %vm99, %v187, 0
    %190 = vmatpush.msra.mxu0 0.0
    %191 = vmatpush.msra.mxu0 0.0
    %192 = vmatpush.msra.mxu0 0.0
    %193 = vmatpush.msra.mxu0 0.0
    %194 = vmatpush.msra.mxu0 0.0
    %195 = vmatpush.msra.mxu0 0.0
    %196 = vmatpush.msra.mxu0 0.0
    %197 = vmatpush.msra.mxu0 0.0
    %198 = vmatpush.msra.mxu0 0.0
    %199 = vmatpush.msra.mxu0 0.0
    %200 = vmatpush.msra.mxu0 0.0
    %201 = vmatpush.msra.mxu0 0.0
    %202 = vmatpush.msra.mxu0 %v69
    %203 = vmatpush.msra.mxu0 %v68
    %204 = vmatpush.msra.mxu0 %v67
    %205 = vmatpush.msra.mxu0 %v66
    %206 = vmatmul.f32.gmra.mxu0 %v188
    %v207 = vpop.f32.mrf.mxu0
    %v208 = vadd.f32 0.0, %v207
    %209 = vdwg.mxu0
    %v210 = vadd.f32 %v183, %v208
    %v211 = vxor.u32 %v210, 2147483648
    %v212 = vmul.f32 %v211, 1.442695
    %v213 = vpow.pop %v212
    %v214 = vadd.f32 %v213, 1.0
    %v215 = vrcp.pop %v214
    %v216 = vmul.f32 %v214, %v215
    %v217 = vsub.f32 1.0, %v216
    %v218 = vmul.f32 %v215, %v217
    %v219 = vadd.f32 %v215, %v218
    %vm220 = vweird.f32 %v214
    %vm221 = vweird.f32 %v215
    %vm222 = vmor %vm220, %vm221
    %v223 = vsel %vm222, %v215, %v219
    %v224 = vand.u32 2147483647, %v214
    %vm225 = vcmp.eq.f32.partialorder %v224, 8.507059e+37
    %v226 = vand.u32 %v214, 2147483648
    %v227 = vor.u32 1.1754944e-38, %v226
    %v228 = vsel %vm225, %v227, %v223
    %v229 = vmul.f32 1.0, %v228
    %v230 = vtanh.pop %v210
    %v231 = vmul.f32 %v229, %v154
    %233 = vrot.lane.b32.xlu0 %v230, 32
    %v234 = vpop.permute.xlu0 %233
    %v236 = vmul.f32 %v229, %v234
    %238 = vrot.lane.b32.xlu0 %v236, 32
    %v239 = vpop.permute.xlu0 %238
    %v241 = vadd.f32 %v231, %v239
    %v242 = vtanh.pop %v241
    %244 = vrot.lane.b32.xlu0 %v242, 32
    %v245 = vpop.permute.xlu0 %244
    %v247 = vmul.f32 %v229, %v245
    %v248 = vmax.f32 %v160, %v247
    %249 = vrot.lane.b32.xlu0 %v71, 96
    %v250 = vpop.permute.xlu0 %249
    %v251 = vsel %vm75, %v250, 0
    %253 = vmatpush.msra.mxu0 0.0
    %254 = vmatpush.msra.mxu0 0.0
    %255 = vmatpush.msra.mxu0 0.0
    %256 = vmatpush.msra.mxu0 0.0
    %257 = vmatpush.msra.mxu0 0.0
    %258 = vmatpush.msra.mxu0 0.0
    %259 = vmatpush.msra.mxu0 0.0
    %260 = vmatpush.msra.mxu0 0.0
    %261 = vmatpush.msra.mxu0 0.0
    %262 = vmatpush.msra.mxu0 0.0
    %263 = vmatpush.msra.mxu0 0.0
    %264 = vmatpush.msra.mxu0 0.0
    %265 = vmatpush.msra.mxu0 0.0
    %266 = vmatpush.msra.mxu0 0.0
    %267 = vmatpush.msra.mxu0 %v65
    %268 = vmatpush.msra.mxu0 %v64
    %269 = vmatmul.f32.gmra.mxu0 %v251
    %v270 = vpop.f32.mrf.mxu0
    %v271 = vadd.f32 %v73, %v270
    %272 = vdwg.mxu0
    %274 = vrot.lane.b32.xlu0 %v247, 64
    %v275 = vpop.permute.xlu0 %274
    %v276 = vsel %vm99, %v275, 0
    %278 = vmatpush.msra.mxu0 0.0
    %279 = vmatpush.msra.mxu0 0.0
    %280 = vmatpush.msra.mxu0 0.0
    %281 = vmatpush.msra.mxu0 0.0
    %282 = vmatpush.msra.mxu0 0.0
    %283 = vmatpush.msra.mxu0 0.0
    %284 = vmatpush.msra.mxu0 0.0
    %285 = vmatpush.msra.mxu0 0.0
    %286 = vmatpush.msra.mxu0 0.0
    %287 = vmatpush.msra.mxu0 0.0
    %288 = vmatpush.msra.mxu0 0.0
    %289 = vmatpush.msra.mxu0 0.0
    %290 = vmatpush.msra.mxu0 %v69
    %291 = vmatpush.msra.mxu0 %v68
    %292 = vmatpush.msra.mxu0 %v67
    %293 = vmatpush.msra.mxu0 %v66
    %294 = vmatmul.f32.gmra.mxu0 %v276
    %v295 = vpop.f32.mrf.mxu0
    %v296 = vadd.f32 0.0, %v295
    %297 = vdwg.mxu0
    %v298 = vadd.f32 %v271, %v296
    %v299 = vxor.u32 %v298, 2147483648
    %v300 = vmul.f32 %v299, 1.442695
    %v301 = vpow.pop %v300
    %v302 = vadd.f32 %v301, 1.0
    %v303 = vrcp.pop %v302
    %v304 = vmul.f32 %v302, %v303
    %v305 = vsub.f32 1.0, %v304
    %v306 = vmul.f32 %v303, %v305
    %v307 = vadd.f32 %v303, %v306
    %vm308 = vweird.f32 %v302
    %vm309 = vweird.f32 %v303
    %vm310 = vmor %vm308, %vm309
    %v311 = vsel %vm310, %v303, %v307
    %v312 = vand.u32 2147483647, %v302
    %vm313 = vcmp.eq.f32.partialorder %v312, 8.507059e+37
    %v314 = vand.u32 %v302, 2147483648
    %v315 = vor.u32 1.1754944e-38, %v314
    %v316 = vsel %vm313, %v315, %v311
    %v317 = vmul.f32 1.0, %v316
    %v318 = vtanh.pop %v298
    %v319 = vmul.f32 %v317, %v241
    %321 = vrot.lane.b32.xlu0 %v318, 32
    %v322 = vpop.permute.xlu0 %321
    %v324 = vmul.f32 %v317, %v322
    %326 = vrot.lane.b32.xlu0 %v324, 32
    %v327 = vpop.permute.xlu0 %326
    %v329 = vadd.f32 %v319, %v327
    %v330 = vtanh.pop %v329
    %332 = vrot.lane.b32.xlu0 %v330, 32
    %v333 = vpop.permute.xlu0 %332
    %v335 = vmul.f32 %v317, %v333
    %v336 = vmax.f32 %v248, %v335
    %337 = vrot.lane.b32.xlu0 %v71, 80
    %v338 = vpop.permute.xlu0 %337
    %v339 = vsel %vm75, %v338, 0
    %341 = vmatpush.msra.mxu0 0.0
    %342 = vmatpush.msra.mxu0 0.0
    %343 = vmatpush.msra.mxu0 0.0
    %344 = vmatpush.msra.mxu0 0.0
    %345 = vmatpush.msra.mxu0 0.0
    %346 = vmatpush.msra.mxu0 0.0
    %347 = vmatpush.msra.mxu0 0.0
    %348 = vmatpush.msra.mxu0 0.0
    %349 = vmatpush.msra.mxu0 0.0
    %350 = vmatpush.msra.mxu0 0.0
    %351 = vmatpush.msra.mxu0 0.0
    %352 = vmatpush.msra.mxu0 0.0
    %353 = vmatpush.msra.mxu0 0.0
    %354 = vmatpush.msra.mxu0 0.0
    %355 = vmatpush.msra.mxu0 %v65
    %356 = vmatpush.msra.mxu0 %v64
    %357 = vmatmul.f32.gmra.mxu0 %v339
    %v358 = vpop.f32.mrf.mxu0
    %v359 = vadd.f32 %v73, %v358
    %360 = vdwg.mxu0
    %362 = vrot.lane.b32.xlu0 %v335, 64
    %v363 = vpop.permute.xlu0 %362
    %v364 = vsel %vm99, %v363, 0
    %366 = vmatpush.msra.mxu0 0.0
    %367 = vmatpush.msra.mxu0 0.0
    %368 = vmatpush.msra.mxu0 0.0
    %369 = vmatpush.msra.mxu0 0.0
    %370 = vmatpush.msra.mxu0 0.0
    %371 = vmatpush.msra.mxu0 0.0
    %372 = vmatpush.msra.mxu0 0.0
    %373 = vmatpush.msra.mxu0 0.0
    %374 = vmatpush.msra.mxu0 0.0
    %375 = vmatpush.msra.mxu0 0.0
    %376 = vmatpush.msra.mxu0 0.0
    %377 = vmatpush.msra.mxu0 0.0
    %378 = vmatpush.msra.mxu0 %v69
    %379 = vmatpush.msra.mxu0 %v68
    %380 = vmatpush.msra.mxu0 %v67
    %381 = vmatpush.msra.mxu0 %v66
    %382 = vmatmul.f32.gmra.mxu0 %v364
    %v383 = vpop.f32.mrf.mxu0
    %v384 = vadd.f32 0.0, %v383
    %385 = vdwg.mxu0
    %v386 = vadd.f32 %v359, %v384
    %v387 = vxor.u32 %v386, 2147483648
    %v388 = vmul.f32 %v387, 1.442695
    %v389 = vpow.pop %v388
    %v390 = vadd.f32 %v389, 1.0
    %v391 = vrcp.pop %v390
    %v392 = vmul.f32 %v390, %v391
    %v393 = vsub.f32 1.0, %v392
    %v394 = vmul.f32 %v391, %v393
    %v395 = vadd.f32 %v391, %v394
    %vm396 = vweird.f32 %v390
    %vm397 = vweird.f32 %v391
    %vm398 = vmor %vm396, %vm397
    %v399 = vsel %vm398, %v391, %v395
    %v400 = vand.u32 2147483647, %v390
    %vm401 = vcmp.eq.f32.partialorder %v400, 8.507059e+37
    %v402 = vand.u32 %v390, 2147483648
    %v403 = vor.u32 1.1754944e-38, %v402
    %v404 = vsel %vm401, %v403, %v399
    %v405 = vmul.f32 1.0, %v404
    %v406 = vtanh.pop %v386
    %v407 = vmul.f32 %v405, %v329
    %409 = vrot.lane.b32.xlu0 %v406, 32
    %v410 = vpop.permute.xlu0 %409
    %v412 = vmul.f32 %v405, %v410
    %414 = vrot.lane.b32.xlu0 %v412, 32
    %v415 = vpop.permute.xlu0 %414
    %v417 = vadd.f32 %v407, %v415
    %v418 = vtanh.pop %v417
    %420 = vrot.lane.b32.xlu0 %v418, 32
    %v421 = vpop.permute.xlu0 %420
    %v423 = vmul.f32 %v405, %v421
    %v424 = vmax.f32 %v336, %v423
    %425 = vrot.lane.b32.xlu0 %v71, 64
    %v426 = vpop.permute.xlu0 %425
    %v427 = vsel %vm75, %v426, 0
    %429 = vmatpush.msra.mxu0 0.0
    %430 = vmatpush.msra.mxu0 0.0
    %431 = vmatpush.msra.mxu0 0.0
    %432 = vmatpush.msra.mxu0 0.0
    %433 = vmatpush.msra.mxu0 0.0
    %434 = vmatpush.msra.mxu0 0.0
    %435 = vmatpush.msra.mxu0 0.0
    %436 = vmatpush.msra.mxu0 0.0
    %437 = vmatpush.msra.mxu0 0.0
    %438 = vmatpush.msra.mxu0 0.0
    %439 = vmatpush.msra.mxu0 0.0
    %440 = vmatpush.msra.mxu0 0.0
    %441 = vmatpush.msra.mxu0 0.0
    %442 = vmatpush.msra.mxu0 0.0
    %443 = vmatpush.msra.mxu0 %v65
    %444 = vmatpush.msra.mxu0 %v64
    %445 = vmatmul.f32.gmra.mxu0 %v427
    %v446 = vpop.f32.mrf.mxu0
    %v447 = vadd.f32 %v73, %v446
    %448 = vdwg.mxu0
    %450 = vrot.lane.b32.xlu0 %v423, 64
    %v451 = vpop.permute.xlu0 %450
    %v452 = vsel %vm99, %v451, 0
    %454 = vmatpush.msra.mxu0 0.0
    %455 = vmatpush.msra.mxu0 0.0
    %456 = vmatpush.msra.mxu0 0.0
    %457 = vmatpush.msra.mxu0 0.0
    %458 = vmatpush.msra.mxu0 0.0
    %459 = vmatpush.msra.mxu0 0.0
    %460 = vmatpush.msra.mxu0 0.0
    %461 = vmatpush.msra.mxu0 0.0
    %462 = vmatpush.msra.mxu0 0.0
    %463 = vmatpush.msra.mxu0 0.0
    %464 = vmatpush.msra.mxu0 0.0
    %465 = vmatpush.msra.mxu0 0.0
    %466 = vmatpush.msra.mxu0 %v69
    %467 = vmatpush.msra.mxu0 %v68
    %468 = vmatpush.msra.mxu0 %v67
    %469 = vmatpush.msra.mxu0 %v66
    %470 = vmatmul.f32.gmra.mxu0 %v452
    %v471 = vpop.f32.mrf.mxu0
    %v472 = vadd.f32 0.0, %v471
    %473 = vdwg.mxu0
    %v474 = vadd.f32 %v447, %v472
    %v475 = vxor.u32 %v474, 2147483648
    %v476 = vmul.f32 %v475, 1.442695
    %v477 = vpow.pop %v476
    %v478 = vadd.f32 %v477, 1.0
    %v479 = vrcp.pop %v478
    %v480 = vmul.f32 %v478, %v479
    %v481 = vsub.f32 1.0, %v480
    %v482 = vmul.f32 %v479, %v481
    %v483 = vadd.f32 %v479, %v482
    %vm484 = vweird.f32 %v478
    %vm485 = vweird.f32 %v479
    %vm486 = vmor %vm484, %vm485
    %v487 = vsel %vm486, %v479, %v483
    %v488 = vand.u32 2147483647, %v478
    %vm489 = vcmp.eq.f32.partialorder %v488, 8.507059e+37
    %v490 = vand.u32 %v478, 2147483648
    %v491 = vor.u32 1.1754944e-38, %v490
    %v492 = vsel %vm489, %v491, %v487
    %v493 = vmul.f32 1.0, %v492
    %v494 = vtanh.pop %v474
    %v495 = vmul.f32 %v493, %v417
    %497 = vrot.lane.b32.xlu0 %v494, 32
    %v498 = vpop.permute.xlu0 %497
    %v500 = vmul.f32 %v493, %v498
    %502 = vrot.lane.b32.xlu0 %v500, 32
    %v503 = vpop.permute.xlu0 %502
    %v505 = vadd.f32 %v495, %v503
    %v506 = vtanh.pop %v505
    %508 = vrot.lane.b32.xlu0 %v506, 32
    %v509 = vpop.permute.xlu0 %508
    %v511 = vmul.f32 %v493, %v509
    %v512 = vmax.f32 %v424, %v511
    %513 = vrot.lane.b32.xlu0 %v71, 48
    %v514 = vpop.permute.xlu0 %513
    %v515 = vsel %vm75, %v514, 0
    %517 = vmatpush.msra.mxu0 0.0
    %518 = vmatpush.msra.mxu0 0.0
    %519 = vmatpush.msra.mxu0 0.0
    %520 = vmatpush.msra.mxu0 0.0
    %521 = vmatpush.msra.mxu0 0.0
    %522 = vmatpush.msra.mxu0 0.0
    %523 = vmatpush.msra.mxu0 0.0
    %524 = vmatpush.msra.mxu0 0.0
    %525 = vmatpush.msra.mxu0 0.0
    %526 = vmatpush.msra.mxu0 0.0
    %527 = vmatpush.msra.mxu0 0.0
    %528 = vmatpush.msra.mxu0 0.0
    %529 = vmatpush.msra.mxu0 0.0
    %530 = vmatpush.msra.mxu0 0.0
    %531 = vmatpush.msra.mxu0 %v65
    %532 = vmatpush.msra.mxu0 %v64
    %533 = vmatmul.f32.gmra.mxu0 %v515
    %v534 = vpop.f32.mrf.mxu0
    %v535 = vadd.f32 %v73, %v534
    %536 = vdwg.mxu0
    %538 = vrot.lane.b32.xlu0 %v511, 64
    %v539 = vpop.permute.xlu0 %538
    %v540 = vsel %vm99, %v539, 0
    %542 = vmatpush.msra.mxu0 0.0
    %543 = vmatpush.msra.mxu0 0.0
    %544 = vmatpush.msra.mxu0 0.0
    %545 = vmatpush.msra.mxu0 0.0
    %546 = vmatpush.msra.mxu0 0.0
    %547 = vmatpush.msra.mxu0 0.0
    %548 = vmatpush.msra.mxu0 0.0
    %549 = vmatpush.msra.mxu0 0.0
    %550 = vmatpush.msra.mxu0 0.0
    %551 = vmatpush.msra.mxu0 0.0
    %552 = vmatpush.msra.mxu0 0.0
    %553 = vmatpush.msra.mxu0 0.0
    %554 = vmatpush.msra.mxu0 %v69
    %555 = vmatpush.msra.mxu0 %v68
    %556 = vmatpush.msra.mxu0 %v67
    %557 = vmatpush.msra.mxu0 %v66
    %558 = vmatmul.f32.gmra.mxu0 %v540
    %v559 = vpop.f32.mrf.mxu0
    %v560 = vadd.f32 0.0, %v559
    %561 = vdwg.mxu0
    %v562 = vadd.f32 %v535, %v560
    %v563 = vxor.u32 %v562, 2147483648
    %v564 = vmul.f32 %v563, 1.442695
    %v565 = vpow.pop %v564
    %v566 = vadd.f32 %v565, 1.0
    %v567 = vrcp.pop %v566
    %v568 = vmul.f32 %v566, %v567
    %v569 = vsub.f32 1.0, %v568
    %v570 = vmul.f32 %v567, %v569
    %v571 = vadd.f32 %v567, %v570
    %vm572 = vweird.f32 %v566
    %vm573 = vweird.f32 %v567
    %vm574 = vmor %vm572, %vm573
    %v575 = vsel %vm574, %v567, %v571
    %v576 = vand.u32 2147483647, %v566
    %vm577 = vcmp.eq.f32.partialorder %v576, 8.507059e+37
    %v578 = vand.u32 %v566, 2147483648
    %v579 = vor.u32 1.1754944e-38, %v578
    %v580 = vsel %vm577, %v579, %v575
    %v581 = vmul.f32 1.0, %v580
    %v582 = vtanh.pop %v562
    %v583 = vmul.f32 %v581, %v505
    %585 = vrot.lane.b32.xlu0 %v582, 32
    %v586 = vpop.permute.xlu0 %585
    %v588 = vmul.f32 %v581, %v586
    %590 = vrot.lane.b32.xlu0 %v588, 32
    %v591 = vpop.permute.xlu0 %590
    %v593 = vadd.f32 %v583, %v591
    %v594 = vtanh.pop %v593
    %596 = vrot.lane.b32.xlu0 %v594, 32
    %v597 = vpop.permute.xlu0 %596
    %v599 = vmul.f32 %v581, %v597
    %v600 = vmax.f32 %v512, %v599
    %601 = vrot.lane.b32.xlu0 %v71, 32
    %v602 = vpop.permute.xlu0 %601
    %v603 = vsel %vm75, %v602, 0
    %605 = vmatpush.msra.mxu0 0.0
    %606 = vmatpush.msra.mxu0 0.0
    %607 = vmatpush.msra.mxu0 0.0
    %608 = vmatpush.msra.mxu0 0.0
    %609 = vmatpush.msra.mxu0 0.0
    %610 = vmatpush.msra.mxu0 0.0
    %611 = vmatpush.msra.mxu0 0.0
    %612 = vmatpush.msra.mxu0 0.0
    %613 = vmatpush.msra.mxu0 0.0
    %614 = vmatpush.msra.mxu0 0.0
    %615 = vmatpush.msra.mxu0 0.0
    %616 = vmatpush.msra.mxu0 0.0
    %617 = vmatpush.msra.mxu0 0.0
    %618 = vmatpush.msra.mxu0 0.0
    %619 = vmatpush.msra.mxu0 %v65
    %620 = vmatpush.msra.mxu0 %v64
    %621 = vmatmul.f32.gmra.mxu0 %v603
    %v622 = vpop.f32.mrf.mxu0
    %v623 = vadd.f32 %v73, %v622
    %624 = vdwg.mxu0
    %626 = vrot.lane.b32.xlu0 %v599, 64
    %v627 = vpop.permute.xlu0 %626
    %v628 = vsel %vm99, %v627, 0
    %630 = vmatpush.msra.mxu0 0.0
    %631 = vmatpush.msra.mxu0 0.0
    %632 = vmatpush.msra.mxu0 0.0
    %633 = vmatpush.msra.mxu0 0.0
    %634 = vmatpush.msra.mxu0 0.0
    %635 = vmatpush.msra.mxu0 0.0
    %636 = vmatpush.msra.mxu0 0.0
    %637 = vmatpush.msra.mxu0 0.0
    %638 = vmatpush.msra.mxu0 0.0
    %639 = vmatpush.msra.mxu0 0.0
    %640 = vmatpush.msra.mxu0 0.0
    %641 = vmatpush.msra.mxu0 0.0
    %642 = vmatpush.msra.mxu0 %v69
    %643 = vmatpush.msra.mxu0 %v68
    %644 = vmatpush.msra.mxu0 %v67
    %645 = vmatpush.msra.mxu0 %v66
    %646 = vmatmul.f32.gmra.mxu0 %v628
    %v647 = vpop.f32.mrf.mxu0
    %v648 = vadd.f32 0.0, %v647
    %649 = vdwg.mxu0
    %v650 = vadd.f32 %v623, %v648
    %v651 = vxor.u32 %v650, 2147483648
    %v652 = vmul.f32 %v651, 1.442695
    %v653 = vpow.pop %v652
    %v654 = vadd.f32 %v653, 1.0
    %v655 = vrcp.pop %v654
    %v656 = vmul.f32 %v654, %v655
    %v657 = vsub.f32 1.0, %v656
    %v658 = vmul.f32 %v655, %v657
    %v659 = vadd.f32 %v655, %v658
    %vm660 = vweird.f32 %v654
    %vm661 = vweird.f32 %v655
    %vm662 = vmor %vm660, %vm661
    %v663 = vsel %vm662, %v655, %v659
    %v664 = vand.u32 2147483647, %v654
    %vm665 = vcmp.eq.f32.partialorder %v664, 8.507059e+37
    %v666 = vand.u32 %v654, 2147483648
    %v667 = vor.u32 1.1754944e-38, %v666
    %v668 = vsel %vm665, %v667, %v663
    %v669 = vmul.f32 1.0, %v668
    %v670 = vtanh.pop %v650
    %v671 = vmul.f32 %v669, %v593
    %673 = vrot.lane.b32.xlu0 %v670, 32
    %v674 = vpop.permute.xlu0 %673
    %v676 = vmul.f32 %v669, %v674
    %678 = vrot.lane.b32.xlu0 %v676, 32
    %v679 = vpop.permute.xlu0 %678
    %v681 = vadd.f32 %v671, %v679
    %v682 = vtanh.pop %v681
    %684 = vrot.lane.b32.xlu0 %v682, 32
    %v685 = vpop.permute.xlu0 %684
    %v687 = vmul.f32 %v669, %v685
    %v688 = vmax.f32 %v600, %v687
    %689 = vrot.lane.b32.xlu0 %v71, 16
    %v690 = vpop.permute.xlu0 %689
    %v691 = vsel %vm75, %v690, 0
    %693 = vmatpush.msra.mxu0 0.0
    %694 = vmatpush.msra.mxu0 0.0
    %695 = vmatpush.msra.mxu0 0.0
    %696 = vmatpush.msra.mxu0 0.0
    %697 = vmatpush.msra.mxu0 0.0
    %698 = vmatpush.msra.mxu0 0.0
    %699 = vmatpush.msra.mxu0 0.0
    %700 = vmatpush.msra.mxu0 0.0
    %701 = vmatpush.msra.mxu0 0.0
    %702 = vmatpush.msra.mxu0 0.0
    %703 = vmatpush.msra.mxu0 0.0
    %704 = vmatpush.msra.mxu0 0.0
    %705 = vmatpush.msra.mxu0 0.0
    %706 = vmatpush.msra.mxu0 0.0
    %707 = vmatpush.msra.mxu0 %v65
    %708 = vmatpush.msra.mxu0 %v64
    %709 = vmatmul.f32.gmra.mxu0 %v691
    %v710 = vpop.f32.mrf.mxu0
    %v711 = vadd.f32 %v73, %v710
    %712 = vdwg.mxu0
    %714 = vrot.lane.b32.xlu0 %v687, 64
    %v715 = vpop.permute.xlu0 %714
    %v716 = vsel %vm99, %v715, 0
    %718 = vmatpush.msra.mxu0 0.0
    %719 = vmatpush.msra.mxu0 0.0
    %720 = vmatpush.msra.mxu0 0.0
    %721 = vmatpush.msra.mxu0 0.0
    %722 = vmatpush.msra.mxu0 0.0
    %723 = vmatpush.msra.mxu0 0.0
    %724 = vmatpush.msra.mxu0 0.0
    %725 = vmatpush.msra.mxu0 0.0
    %726 = vmatpush.msra.mxu0 0.0
    %727 = vmatpush.msra.mxu0 0.0
    %728 = vmatpush.msra.mxu0 0.0
    %729 = vmatpush.msra.mxu0 0.0
    %730 = vmatpush.msra.mxu0 %v69
    %731 = vmatpush.msra.mxu0 %v68
    %732 = vmatpush.msra.mxu0 %v67
    %733 = vmatpush.msra.mxu0 %v66
    %734 = vmatmul.f32.gmra.mxu0 %v716
    %v735 = vpop.f32.mrf.mxu0
    %v736 = vadd.f32 0.0, %v735
    %737 = vdwg.mxu0
    %v738 = vadd.f32 %v711, %v736
    %v739 = vxor.u32 %v738, 2147483648
    %v740 = vmul.f32 %v739, 1.442695
    %v741 = vpow.pop %v740
    %v742 = vadd.f32 %v741, 1.0
    %v743 = vrcp.pop %v742
    %v744 = vmul.f32 %v742, %v743
    %v745 = vsub.f32 1.0, %v744
    %v746 = vmul.f32 %v743, %v745
    %v747 = vadd.f32 %v743, %v746
    %vm748 = vweird.f32 %v742
    %vm749 = vweird.f32 %v743
    %vm750 = vmor %vm748, %vm749
    %v751 = vsel %vm750, %v743, %v747
    %v752 = vand.u32 2147483647, %v742
    %vm753 = vcmp.eq.f32.partialorder %v752, 8.507059e+37
    %v754 = vand.u32 %v742, 2147483648
    %v755 = vor.u32 1.1754944e-38, %v754
    %v756 = vsel %vm753, %v755, %v751
    %v757 = vmul.f32 1.0, %v756
    %v758 = vtanh.pop %v738
    %v759 = vmul.f32 %v757, %v681
    %761 = vrot.lane.b32.xlu0 %v758, 32
    %v762 = vpop.permute.xlu0 %761
    %v764 = vmul.f32 %v757, %v762
    %766 = vrot.lane.b32.xlu0 %v764, 32
    %v767 = vpop.permute.xlu0 %766
    %v769 = vadd.f32 %v759, %v767
    %v770 = vtanh.pop %v769
    %772 = vrot.lane.b32.xlu0 %v770, 32
    %v773 = vpop.permute.xlu0 %772
    %v775 = vmul.f32 %v757, %v773
    %v776 = vmax.f32 %v688, %v775
    %v777 = vld [vmem:[#allocation2] sm:$0xff]
    %v778 = vld [vmem:[#allocation2 + $0x8] sm:$0xff]
    %v779 = vld [vmem:[#allocation2 + $0x10] sm:$0xff]
    %v780 = vld [vmem:[#allocation2 + $0x18] sm:$0xff]
    %v781 = vld [vmem:[%s6] sm:$0x1]
    %v783 = vperm.slane %v781, 0
    %786 = vrot.lane.b32.xlu0 %v776, 64
    %v787 = vpop.permute.xlu0 %786
    %v788 = vsel %vm99, %v787, 0
    %790 = vmatpush.msra.mxu0 0.0
    %791 = vmatpush.msra.mxu0 0.0
    %792 = vmatpush.msra.mxu0 0.0
    %793 = vmatpush.msra.mxu0 0.0
    %794 = vmatpush.msra.mxu0 0.0
    %795 = vmatpush.msra.mxu0 0.0
    %796 = vmatpush.msra.mxu0 0.0
    %797 = vmatpush.msra.mxu0 0.0
    %798 = vmatpush.msra.mxu0 0.0
    %799 = vmatpush.msra.mxu0 0.0
    %800 = vmatpush.msra.mxu0 0.0
    %801 = vmatpush.msra.mxu0 0.0
    %802 = vmatpush.msra.mxu0 %v780
    %803 = vmatpush.msra.mxu0 %v779
    %804 = vmatpush.msra.mxu0 %v778
    %805 = vmatpush.msra.mxu0 %v777
    %806 = vmatmul.f32.gmra.mxu0 %v788
    %v807 = vpop.f32.mrf.mxu0
    %v808 = vadd.f32 %v783, %v807
    %809 = vdwg.mxu0
    %v810 = vld [vmem:[#allocation4] sm:$0xff]
    %v811 = vld [vmem:[#allocation4 + $0x8] sm:$0xff]
    %v812 = vld [vmem:[#allocation4 + $0x10] sm:$0xff]
    %v813 = vld [vmem:[#allocation4 + $0x18] sm:$0xff]
    %v814 = vld [vmem:[%s7] sm:$0xff]
    %v815 = vld [vmem:[%s7 + $0x8] sm:$0xff]
    %v816 = vld [vmem:[%s7 + $0x10] sm:$0xff]
    %v817 = vld [vmem:[%s7 + $0x18] sm:$0xff]
    %v818 = vld [vmem:[%s8] sm:$0x1]
    %819 = vmatpush.msra.mxu0 0.0
    %820 = vmatpush.msra.mxu0 0.0
    %821 = vmatpush.msra.mxu0 0.0
    %822 = vmatpush.msra.mxu0 0.0
    %823 = vmatpush.msra.mxu0 0.0
    %824 = vmatpush.msra.mxu0 0.0
    %825 = vmatpush.msra.mxu0 0.0
    %826 = vmatpush.msra.mxu0 0.0
    %827 = vmatpush.msra.mxu0 0.0
    %828 = vmatpush.msra.mxu0 0.0
    %829 = vmatpush.msra.mxu0 0.0
    %830 = vmatpush.msra.mxu0 0.0
    %831 = vmatpush.msra.mxu0 %v813
    %832 = vmatpush.msra.mxu0 %v812
    %833 = vmatpush.msra.mxu0 %v811
    %834 = vmatpush.msra.mxu0 %v810
    %835 = vmatmul.f32.gmra.mxu0 %v101
    %v836 = vpop.f32.mrf.mxu0
    %v837 = vadd.f32 0.0, %v836
    %838 = vdwg.mxu0
    %v839 = vadd.f32 %v808, %v837
    %v840 = vxor.u32 %v839, 2147483648
    %v841 = vmul.f32 %v840, 1.442695
    %v842 = vpow.pop %v841
    %v843 = vadd.f32 %v842, 1.0
    %v844 = vrcp.pop %v843
    %v845 = vmul.f32 %v843, %v844
    %v846 = vsub.f32 1.0, %v845
    %v847 = vmul.f32 %v844, %v846
    %v848 = vadd.f32 %v844, %v847
    %vm849 = vweird.f32 %v843
    %vm850 = vweird.f32 %v844
    %vm851 = vmor %vm849, %vm850
    %v852 = vsel %vm851, %v844, %v848
    %v853 = vand.u32 2147483647, %v843
    %vm854 = vcmp.eq.f32.partialorder %v853, 8.507059e+37
    %v855 = vand.u32 %v843, 2147483648
    %v856 = vor.u32 1.1754944e-38, %v855
    %v857 = vsel %vm854, %v856, %v852
    %v858 = vmul.f32 1.0, %v857
    %v859 = vtanh.pop %v839
    %v860 = vmul.f32 %v858, 0.0
    %862 = vrot.lane.b32.xlu0 %v859, 32
    %v863 = vpop.permute.xlu0 %862
    %v865 = vmul.f32 %v858, %v863
    %867 = vrot.lane.b32.xlu0 %v865, 32
    %v868 = vpop.permute.xlu0 %867
    %v870 = vadd.f32 %v860, %v868
    %v871 = vtanh.pop %v870
    %873 = vrot.lane.b32.xlu0 %v871, 32
    %v874 = vpop.permute.xlu0 %873
    %v876 = vmul.f32 %v858, %v874
    %v878 = vperm.slane %v818, 0
    %881 = vrot.lane.b32.xlu0 %v876, 64
    %v882 = vpop.permute.xlu0 %881
    %v883 = vsel %vm99, %v882, 0
    %885 = vmatpush.msra.mxu0 0.0
    %886 = vmatpush.msra.mxu0 0.0
    %887 = vmatpush.msra.mxu0 0.0
    %888 = vmatpush.msra.mxu0 0.0
    %889 = vmatpush.msra.mxu0 0.0
    %890 = vmatpush.msra.mxu0 0.0
    %891 = vmatpush.msra.mxu0 0.0
    %892 = vmatpush.msra.mxu0 0.0
    %893 = vmatpush.msra.mxu0 0.0
    %894 = vmatpush.msra.mxu0 0.0
    %895 = vmatpush.msra.mxu0 0.0
    %896 = vmatpush.msra.mxu0 0.0
    %897 = vmatpush.msra.mxu0 %v817
    %898 = vmatpush.msra.mxu0 %v816
    %899 = vmatpush.msra.mxu0 %v815
    %900 = vmatpush.msra.mxu0 %v814
    %901 = vmatmul.f32.gmra.mxu0 %v883
    %v902 = vpop.f32.mrf.mxu0
    %v903 = vadd.f32 %v878, %v902
    %904 = vdwg.mxu0
    %vm905 = vcmask 123904
    %906 = vst.msk [vmem:[%s9] sm:$0x3] %vm905, %v903
    %907 = vmatpush.msra.mxu0 0.0
    %908 = vmatpush.msra.mxu0 0.0
    %909 = vmatpush.msra.mxu0 0.0
    %910 = vmatpush.msra.mxu0 0.0
    %911 = vmatpush.msra.mxu0 0.0
    %912 = vmatpush.msra.mxu0 0.0
    %913 = vmatpush.msra.mxu0 0.0
    %914 = vmatpush.msra.mxu0 0.0
    %915 = vmatpush.msra.mxu0 0.0
    %916 = vmatpush.msra.mxu0 0.0
    %917 = vmatpush.msra.mxu0 0.0
    %918 = vmatpush.msra.mxu0 0.0
    %919 = vmatpush.msra.mxu0 %v813
    %920 = vmatpush.msra.mxu0 %v812
    %921 = vmatpush.msra.mxu0 %v811
    %922 = vmatpush.msra.mxu0 %v810
    %923 = vmatmul.f32.gmra.mxu0 %v883
    %v924 = vpop.f32.mrf.mxu0
    %v925 = vadd.f32 0.0, %v924
    %926 = vdwg.mxu0
    %v927 = vadd.f32 %v808, %v925
    %v928 = vxor.u32 %v927, 2147483648
    %v929 = vmul.f32 %v928, 1.442695
    %v930 = vpow.pop %v929
    %v931 = vadd.f32 %v930, 1.0
    %v932 = vrcp.pop %v931
    %v933 = vmul.f32 %v931, %v932
    %v934 = vsub.f32 1.0, %v933
    %v935 = vmul.f32 %v932, %v934
    %v936 = vadd.f32 %v932, %v935
    %vm937 = vweird.f32 %v931
    %vm938 = vweird.f32 %v932
    %vm939 = vmor %vm937, %vm938
    %v940 = vsel %vm939, %v932, %v936
    %v941 = vand.u32 2147483647, %v931
    %vm942 = vcmp.eq.f32.partialorder %v941, 8.507059e+37
    %v943 = vand.u32 %v931, 2147483648
    %v944 = vor.u32 1.1754944e-38, %v943
    %v945 = vsel %vm942, %v944, %v940
    %v946 = vmul.f32 1.0, %v945
    %v947 = vtanh.pop %v927
    %v948 = vmul.f32 %v946, %v870
    %950 = vrot.lane.b32.xlu0 %v947, 32
    %v951 = vpop.permute.xlu0 %950
    %v953 = vmul.f32 %v946, %v951
    %955 = vrot.lane.b32.xlu0 %v953, 32
    %v956 = vpop.permute.xlu0 %955
    %v958 = vadd.f32 %v948, %v956
    %v959 = vtanh.pop %v958
    %961 = vrot.lane.b32.xlu0 %v959, 32
    %v962 = vpop.permute.xlu0 %961
    %v964 = vmul.f32 %v946, %v962
    %966 = vrot.lane.b32.xlu0 %v964, 64
    %v967 = vpop.permute.xlu0 %966
    %v968 = vsel %vm99, %v967, 0
    %970 = vmatpush.msra.mxu0 0.0
    %971 = vmatpush.msra.mxu0 0.0
    %972 = vmatpush.msra.mxu0 0.0
    %973 = vmatpush.msra.mxu0 0.0
    %974 = vmatpush.msra.mxu0 0.0
    %975 = vmatpush.msra.mxu0 0.0
    %976 = vmatpush.msra.mxu0 0.0
    %977 = vmatpush.msra.mxu0 0.0
    %978 = vmatpush.msra.mxu0 0.0
    %979 = vmatpush.msra.mxu0 0.0
    %980 = vmatpush.msra.mxu0 0.0
    %981 = vmatpush.msra.mxu0 0.0
    %982 = vmatpush.msra.mxu0 %v817
    %983 = vmatpush.msra.mxu0 %v816
    %984 = vmatpush.msra.mxu0 %v815
    %985 = vmatpush.msra.mxu0 %v814
    %986 = vmatmul.f32.gmra.mxu0 %v968
    %v987 = vpop.f32.mrf.mxu0
    %v988 = vadd.f32 %v878, %v987
    %989 = vdwg.mxu0
    %991 = vrot.lane.b32.xlu0 %v988, 16
    %v992 = vpop.permute.xlu0 %991
    %vm994 = vcmask 255104
    %995 = vst.msk [vmem:[%s9] sm:$0x3] %vm994, %v992
    %996 = vmatpush.msra.mxu0 0.0
    %997 = vmatpush.msra.mxu0 0.0
    %998 = vmatpush.msra.mxu0 0.0
    %999 = vmatpush.msra.mxu0 0.0
    %1000 = vmatpush.msra.mxu0 0.0
    %1001 = vmatpush.msra.mxu0 0.0
    %1002 = vmatpush.msra.mxu0 0.0
    %1003 = vmatpush.msra.mxu0 0.0
    %1004 = vmatpush.msra.mxu0 0.0
    %1005 = vmatpush.msra.mxu0 0.0
    %1006 = vmatpush.msra.mxu0 0.0
    %1007 = vmatpush.msra.mxu0 0.0
    %1008 = vmatpush.msra.mxu0 %v813
    %1009 = vmatpush.msra.mxu0 %v812
    %1010 = vmatpush.msra.mxu0 %v811
    %1011 = vmatpush.msra.mxu0 %v810
    %1012 = vmatmul.f32.gmra.mxu0 %v968
    %v1013 = vpop.f32.mrf.mxu0
    %v1014 = vadd.f32 0.0, %v1013
    %1015 = vdwg.mxu0
    %v1016 = vadd.f32 %v808, %v1014
    %v1017 = vxor.u32 %v1016, 2147483648
    %v1018 = vmul.f32 %v1017, 1.442695
    %v1019 = vpow.pop %v1018
    %v1020 = vadd.f32 %v1019, 1.0
    %v1021 = vrcp.pop %v1020
    %v1022 = vmul.f32 %v1020, %v1021
    %v1023 = vsub.f32 1.0, %v1022
    %v1024 = vmul.f32 %v1021, %v1023
    %v1025 = vadd.f32 %v1021, %v1024
    %vm1026 = vweird.f32 %v1020
    %vm1027 = vweird.f32 %v1021
    %vm1028 = vmor %vm1026, %vm1027
    %v1029 = vsel %vm1028, %v1021, %v1025
    %v1030 = vand.u32 2147483647, %v1020
    %vm1031 = vcmp.eq.f32.partialorder %v1030, 8.507059e+37
    %v1032 = vand.u32 %v1020, 2147483648
    %v1033 = vor.u32 1.1754944e-38, %v1032
    %v1034 = vsel %vm1031, %v1033, %v1029
    %v1035 = vmul.f32 1.0, %v1034
    %v1036 = vtanh.pop %v1016
    %v1037 = vmul.f32 %v1035, %v958
    %1039 = vrot.lane.b32.xlu0 %v1036, 32
    %v1040 = vpop.permute.xlu0 %1039
    %v1042 = vmul.f32 %v1035, %v1040
    %1044 = vrot.lane.b32.xlu0 %v1042, 32
    %v1045 = vpop.permute.xlu0 %1044
    %v1047 = vadd.f32 %v1037, %v1045
    %v1048 = vtanh.pop %v1047
    %1050 = vrot.lane.b32.xlu0 %v1048, 32
    %v1051 = vpop.permute.xlu0 %1050
    %v1053 = vmul.f32 %v1035, %v1051
    %1055 = vrot.lane.b32.xlu0 %v1053, 64
    %v1056 = vpop.permute.xlu0 %1055
    %v1057 = vsel %vm99, %v1056, 0
    %1059 = vmatpush.msra.mxu0 0.0
    %1060 = vmatpush.msra.mxu0 0.0
    %1061 = vmatpush.msra.mxu0 0.0
    %1062 = vmatpush.msra.mxu0 0.0
    %1063 = vmatpush.msra.mxu0 0.0
    %1064 = vmatpush.msra.mxu0 0.0
    %1065 = vmatpush.msra.mxu0 0.0
    %1066 = vmatpush.msra.mxu0 0.0
    %1067 = vmatpush.msra.mxu0 0.0
    %1068 = vmatpush.msra.mxu0 0.0
    %1069 = vmatpush.msra.mxu0 0.0
    %1070 = vmatpush.msra.mxu0 0.0
    %1071 = vmatpush.msra.mxu0 %v817
    %1072 = vmatpush.msra.mxu0 %v816
    %1073 = vmatpush.msra.mxu0 %v815
    %1074 = vmatpush.msra.mxu0 %v814
    %1075 = vmatmul.f32.gmra.mxu0 %v1057
    %v1076 = vpop.f32.mrf.mxu0
    %v1077 = vadd.f32 %v878, %v1076
    %1078 = vdwg.mxu0
    %1080 = vrot.lane.b32.xlu0 %v1077, 32
    %v1081 = vpop.permute.xlu0 %1080
    %vm1083 = vcmask 386304
    %1084 = vst.msk [vmem:[%s9] sm:$0x3] %vm1083, %v1081
    %1085 = vmatpush.msra.mxu0 0.0
    %1086 = vmatpush.msra.mxu0 0.0
    %1087 = vmatpush.msra.mxu0 0.0
    %1088 = vmatpush.msra.mxu0 0.0
    %1089 = vmatpush.msra.mxu0 0.0
    %1090 = vmatpush.msra.mxu0 0.0
    %1091 = vmatpush.msra.mxu0 0.0
    %1092 = vmatpush.msra.mxu0 0.0
    %1093 = vmatpush.msra.mxu0 0.0
    %1094 = vmatpush.msra.mxu0 0.0
    %1095 = vmatpush.msra.mxu0 0.0
    %1096 = vmatpush.msra.mxu0 0.0
    %1097 = vmatpush.msra.mxu0 %v813
    %1098 = vmatpush.msra.mxu0 %v812
    %1099 = vmatpush.msra.mxu0 %v811
    %1100 = vmatpush.msra.mxu0 %v810
    %1101 = vmatmul.f32.gmra.mxu0 %v1057
    %v1102 = vpop.f32.mrf.mxu0
    %v1103 = vadd.f32 0.0, %v1102
    %1104 = vdwg.mxu0
    %v1105 = vadd.f32 %v808, %v1103
    %v1106 = vxor.u32 %v1105, 2147483648
    %v1107 = vmul.f32 %v1106, 1.442695
    %v1108 = vpow.pop %v1107
    %v1109 = vadd.f32 %v1108, 1.0
    %v1110 = vrcp.pop %v1109
    %v1111 = vmul.f32 %v1109, %v1110
    %v1112 = vsub.f32 1.0, %v1111
    %v1113 = vmul.f32 %v1110, %v1112
    %v1114 = vadd.f32 %v1110, %v1113
    %vm1115 = vweird.f32 %v1109
    %vm1116 = vweird.f32 %v1110
    %vm1117 = vmor %vm1115, %vm1116
    %v1118 = vsel %vm1117, %v1110, %v1114
    %v1119 = vand.u32 2147483647, %v1109
    %vm1120 = vcmp.eq.f32.partialorder %v1119, 8.507059e+37
    %v1121 = vand.u32 %v1109, 2147483648
    %v1122 = vor.u32 1.1754944e-38, %v1121
    %v1123 = vsel %vm1120, %v1122, %v1118
    %v1124 = vmul.f32 1.0, %v1123
    %v1125 = vtanh.pop %v1105
    %v1126 = vmul.f32 %v1124, %v1047
    %1128 = vrot.lane.b32.xlu0 %v1125, 32
    %v1129 = vpop.permute.xlu0 %1128
    %v1131 = vmul.f32 %v1124, %v1129
    %1133 = vrot.lane.b32.xlu0 %v1131, 32
    %v1134 = vpop.permute.xlu0 %1133
    %v1136 = vadd.f32 %v1126, %v1134
    %v1137 = vtanh.pop %v1136
    %1139 = vrot.lane.b32.xlu0 %v1137, 32
    %v1140 = vpop.permute.xlu0 %1139
    %v1142 = vmul.f32 %v1124, %v1140
    %1144 = vrot.lane.b32.xlu0 %v1142, 64
    %v1145 = vpop.permute.xlu0 %1144
    %v1146 = vsel %vm99, %v1145, 0
    %1148 = vmatpush.msra.mxu0 0.0
    %1149 = vmatpush.msra.mxu0 0.0
    %1150 = vmatpush.msra.mxu0 0.0
    %1151 = vmatpush.msra.mxu0 0.0
    %1152 = vmatpush.msra.mxu0 0.0
    %1153 = vmatpush.msra.mxu0 0.0
    %1154 = vmatpush.msra.mxu0 0.0
    %1155 = vmatpush.msra.mxu0 0.0
    %1156 = vmatpush.msra.mxu0 0.0
    %1157 = vmatpush.msra.mxu0 0.0
    %1158 = vmatpush.msra.mxu0 0.0
    %1159 = vmatpush.msra.mxu0 0.0
    %1160 = vmatpush.msra.mxu0 %v817
    %1161 = vmatpush.msra.mxu0 %v816
    %1162 = vmatpush.msra.mxu0 %v815
    %1163 = vmatpush.msra.mxu0 %v814
    %1164 = vmatmul.f32.gmra.mxu0 %v1146
    %v1165 = vpop.f32.mrf.mxu0
    %v1166 = vadd.f32 %v878, %v1165
    %1167 = vdwg.mxu0
    %1169 = vrot.lane.b32.xlu0 %v1166, 48
    %v1170 = vpop.permute.xlu0 %1169
    %vm1172 = vcmask 517504
    %1173 = vst.msk [vmem:[%s9] sm:$0x3] %vm1172, %v1170
    %1174 = vmatpush.msra.mxu0 0.0
    %1175 = vmatpush.msra.mxu0 0.0
    %1176 = vmatpush.msra.mxu0 0.0
    %1177 = vmatpush.msra.mxu0 0.0
    %1178 = vmatpush.msra.mxu0 0.0
    %1179 = vmatpush.msra.mxu0 0.0
    %1180 = vmatpush.msra.mxu0 0.0
    %1181 = vmatpush.msra.mxu0 0.0
    %1182 = vmatpush.msra.mxu0 0.0
    %1183 = vmatpush.msra.mxu0 0.0
    %1184 = vmatpush.msra.mxu0 0.0
    %1185 = vmatpush.msra.mxu0 0.0
    %1186 = vmatpush.msra.mxu0 %v813
    %1187 = vmatpush.msra.mxu0 %v812
    %1188 = vmatpush.msra.mxu0 %v811
    %1189 = vmatpush.msra.mxu0 %v810
    %1190 = vmatmul.f32.gmra.mxu0 %v1146
    %v1191 = vpop.f32.mrf.mxu0
    %v1192 = vadd.f32 0.0, %v1191
    %1193 = vdwg.mxu0
    %v1194 = vadd.f32 %v808, %v1192
    %v1195 = vxor.u32 %v1194, 2147483648
    %v1196 = vmul.f32 %v1195, 1.442695
    %v1197 = vpow.pop %v1196
    %v1198 = vadd.f32 %v1197, 1.0
    %v1199 = vrcp.pop %v1198
    %v1200 = vmul.f32 %v1198, %v1199
    %v1201 = vsub.f32 1.0, %v1200
    %v1202 = vmul.f32 %v1199, %v1201
    %v1203 = vadd.f32 %v1199, %v1202
    %vm1204 = vweird.f32 %v1198
    %vm1205 = vweird.f32 %v1199
    %vm1206 = vmor %vm1204, %vm1205
    %v1207 = vsel %vm1206, %v1199, %v1203
    %v1208 = vand.u32 2147483647, %v1198
    %vm1209 = vcmp.eq.f32.partialorder %v1208, 8.507059e+37
    %v1210 = vand.u32 %v1198, 2147483648
    %v1211 = vor.u32 1.1754944e-38, %v1210
    %v1212 = vsel %vm1209, %v1211, %v1207
    %v1213 = vmul.f32 1.0, %v1212
    %v1214 = vtanh.pop %v1194
    %v1215 = vmul.f32 %v1213, %v1136
    %1217 = vrot.lane.b32.xlu0 %v1214, 32
    %v1218 = vpop.permute.xlu0 %1217
    %v1220 = vmul.f32 %v1213, %v1218
    %1222 = vrot.lane.b32.xlu0 %v1220, 32
    %v1223 = vpop.permute.xlu0 %1222
    %v1225 = vadd.f32 %v1215, %v1223
    %v1226 = vtanh.pop %v1225
    %1228 = vrot.lane.b32.xlu0 %v1226, 32
    %v1229 = vpop.permute.xlu0 %1228
    %v1231 = vmul.f32 %v1213, %v1229
    %1233 = vrot.lane.b32.xlu0 %v1231, 64
    %v1234 = vpop.permute.xlu0 %1233
    %v1235 = vsel %vm99, %v1234, 0
    %1237 = vmatpush.msra.mxu0 0.0
    %1238 = vmatpush.msra.mxu0 0.0
    %1239 = vmatpush.msra.mxu0 0.0
    %1240 = vmatpush.msra.mxu0 0.0
    %1241 = vmatpush.msra.mxu0 0.0
    %1242 = vmatpush.msra.mxu0 0.0
    %1243 = vmatpush.msra.mxu0 0.0
    %1244 = vmatpush.msra.mxu0 0.0
    %1245 = vmatpush.msra.mxu0 0.0
    %1246 = vmatpush.msra.mxu0 0.0
    %1247 = vmatpush.msra.mxu0 0.0
    %1248 = vmatpush.msra.mxu0 0.0
    %1249 = vmatpush.msra.mxu0 %v817
    %1250 = vmatpush.msra.mxu0 %v816
    %1251 = vmatpush.msra.mxu0 %v815
    %1252 = vmatpush.msra.mxu0 %v814
    %1253 = vmatmul.f32.gmra.mxu0 %v1235
    %v1254 = vpop.f32.mrf.mxu0
    %v1255 = vadd.f32 %v878, %v1254
    %1256 = vdwg.mxu0
    %1258 = vrot.lane.b32.xlu0 %v1255, 64
    %v1259 = vpop.permute.xlu0 %1258
    %vm1261 = vcmask 648704
    %1262 = vst.msk [vmem:[%s9] sm:$0x3] %vm1261, %v1259
    %1263 = vmatpush.msra.mxu0 0.0
    %1264 = vmatpush.msra.mxu0 0.0
    %1265 = vmatpush.msra.mxu0 0.0
    %1266 = vmatpush.msra.mxu0 0.0
    %1267 = vmatpush.msra.mxu0 0.0
    %1268 = vmatpush.msra.mxu0 0.0
    %1269 = vmatpush.msra.mxu0 0.0
    %1270 = vmatpush.msra.mxu0 0.0
    %1271 = vmatpush.msra.mxu0 0.0
    %1272 = vmatpush.msra.mxu0 0.0
    %1273 = vmatpush.msra.mxu0 0.0
    %1274 = vmatpush.msra.mxu0 0.0
    %1275 = vmatpush.msra.mxu0 %v813
    %1276 = vmatpush.msra.mxu0 %v812
    %1277 = vmatpush.msra.mxu0 %v811
    %1278 = vmatpush.msra.mxu0 %v810
    %1279 = vmatmul.f32.gmra.mxu0 %v1235
    %v1280 = vpop.f32.mrf.mxu0
    %v1281 = vadd.f32 0.0, %v1280
    %1282 = vdwg.mxu0
    %v1283 = vadd.f32 %v808, %v1281
    %v1284 = vxor.u32 %v1283, 2147483648
    %v1285 = vmul.f32 %v1284, 1.442695
    %v1286 = vpow.pop %v1285
    %v1287 = vadd.f32 %v1286, 1.0
    %v1288 = vrcp.pop %v1287
    %v1289 = vmul.f32 %v1287, %v1288
    %v1290 = vsub.f32 1.0, %v1289
    %v1291 = vmul.f32 %v1288, %v1290
    %v1292 = vadd.f32 %v1288, %v1291
    %vm1293 = vweird.f32 %v1287
    %vm1294 = vweird.f32 %v1288
    %vm1295 = vmor %vm1293, %vm1294
    %v1296 = vsel %vm1295, %v1288, %v1292
    %v1297 = vand.u32 2147483647, %v1287
    %vm1298 = vcmp.eq.f32.partialorder %v1297, 8.507059e+37
    %v1299 = vand.u32 %v1287, 2147483648
    %v1300 = vor.u32 1.1754944e-38, %v1299
    %v1301 = vsel %vm1298, %v1300, %v1296
    %v1302 = vmul.f32 1.0, %v1301
    %v1303 = vtanh.pop %v1283
    %v1304 = vmul.f32 %v1302, %v1225
    %1306 = vrot.lane.b32.xlu0 %v1303, 32
    %v1307 = vpop.permute.xlu0 %1306
    %v1309 = vmul.f32 %v1302, %v1307
    %1311 = vrot.lane.b32.xlu0 %v1309, 32
    %v1312 = vpop.permute.xlu0 %1311
    %v1314 = vadd.f32 %v1304, %v1312
    %v1315 = vtanh.pop %v1314
    %1317 = vrot.lane.b32.xlu0 %v1315, 32
    %v1318 = vpop.permute.xlu0 %1317
    %v1320 = vmul.f32 %v1302, %v1318
    %1322 = vrot.lane.b32.xlu0 %v1320, 64
    %v1323 = vpop.permute.xlu0 %1322
    %v1324 = vsel %vm99, %v1323, 0
    %1326 = vmatpush.msra.mxu0 0.0
    %1327 = vmatpush.msra.mxu0 0.0
    %1328 = vmatpush.msra.mxu0 0.0
    %1329 = vmatpush.msra.mxu0 0.0
    %1330 = vmatpush.msra.mxu0 0.0
    %1331 = vmatpush.msra.mxu0 0.0
    %1332 = vmatpush.msra.mxu0 0.0
    %1333 = vmatpush.msra.mxu0 0.0
    %1334 = vmatpush.msra.mxu0 0.0
    %1335 = vmatpush.msra.mxu0 0.0
    %1336 = vmatpush.msra.mxu0 0.0
    %1337 = vmatpush.msra.mxu0 0.0
    %1338 = vmatpush.msra.mxu0 %v817
    %1339 = vmatpush.msra.mxu0 %v816
    %1340 = vmatpush.msra.mxu0 %v815
    %1341 = vmatpush.msra.mxu0 %v814
    %1342 = vmatmul.f32.gmra.mxu0 %v1324
    %v1343 = vpop.f32.mrf.mxu0
    %v1344 = vadd.f32 %v878, %v1343
    %1345 = vdwg.mxu0
    %1347 = vrot.lane.b32.xlu0 %v1344, 80
    %v1348 = vpop.permute.xlu0 %1347
    %vm1350 = vcmask 779904
    %1351 = vst.msk [vmem:[%s9] sm:$0x3] %vm1350, %v1348
    %1352 = vmatpush.msra.mxu0 0.0
    %1353 = vmatpush.msra.mxu0 0.0
    %1354 = vmatpush.msra.mxu0 0.0
    %1355 = vmatpush.msra.mxu0 0.0
    %1356 = vmatpush.msra.mxu0 0.0
    %1357 = vmatpush.msra.mxu0 0.0
    %1358 = vmatpush.msra.mxu0 0.0
    %1359 = vmatpush.msra.mxu0 0.0
    %1360 = vmatpush.msra.mxu0 0.0
    %1361 = vmatpush.msra.mxu0 0.0
    %1362 = vmatpush.msra.mxu0 0.0
    %1363 = vmatpush.msra.mxu0 0.0
    %1364 = vmatpush.msra.mxu0 %v813
    %1365 = vmatpush.msra.mxu0 %v812
    %1366 = vmatpush.msra.mxu0 %v811
    %1367 = vmatpush.msra.mxu0 %v810
    %1368 = vmatmul.f32.gmra.mxu0 %v1324
    %v1369 = vpop.f32.mrf.mxu0
    %v1370 = vadd.f32 0.0, %v1369
    %1371 = vdwg.mxu0
    %v1372 = vadd.f32 %v808, %v1370
    %v1373 = vxor.u32 %v1372, 2147483648
    %v1374 = vmul.f32 %v1373, 1.442695
    %v1375 = vpow.pop %v1374
    %v1376 = vadd.f32 %v1375, 1.0
    %v1377 = vrcp.pop %v1376
    %v1378 = vmul.f32 %v1376, %v1377
    %v1379 = vsub.f32 1.0, %v1378
    %v1380 = vmul.f32 %v1377, %v1379
    %v1381 = vadd.f32 %v1377, %v1380
    %vm1382 = vweird.f32 %v1376
    %vm1383 = vweird.f32 %v1377
    %vm1384 = vmor %vm1382, %vm1383
    %v1385 = vsel %vm1384, %v1377, %v1381
    %v1386 = vand.u32 2147483647, %v1376
    %vm1387 = vcmp.eq.f32.partialorder %v1386, 8.507059e+37
    %v1388 = vand.u32 %v1376, 2147483648
    %v1389 = vor.u32 1.1754944e-38, %v1388
    %v1390 = vsel %vm1387, %v1389, %v1385
    %v1391 = vmul.f32 1.0, %v1390
    %v1392 = vtanh.pop %v1372
    %v1393 = vmul.f32 %v1391, %v1314
    %1395 = vrot.lane.b32.xlu0 %v1392, 32
    %v1396 = vpop.permute.xlu0 %1395
    %v1398 = vmul.f32 %v1391, %v1396
    %1400 = vrot.lane.b32.xlu0 %v1398, 32
    %v1401 = vpop.permute.xlu0 %1400
    %v1403 = vadd.f32 %v1393, %v1401
    %v1404 = vtanh.pop %v1403
    %1406 = vrot.lane.b32.xlu0 %v1404, 32
    %v1407 = vpop.permute.xlu0 %1406
    %v1409 = vmul.f32 %v1391, %v1407
    %1411 = vrot.lane.b32.xlu0 %v1409, 64
    %v1412 = vpop.permute.xlu0 %1411
    %v1413 = vsel %vm99, %v1412, 0
    %1415 = vmatpush.msra.mxu0 0.0
    %1416 = vmatpush.msra.mxu0 0.0
    %1417 = vmatpush.msra.mxu0 0.0
    %1418 = vmatpush.msra.mxu0 0.0
    %1419 = vmatpush.msra.mxu0 0.0
    %1420 = vmatpush.msra.mxu0 0.0
    %1421 = vmatpush.msra.mxu0 0.0
    %1422 = vmatpush.msra.mxu0 0.0
    %1423 = vmatpush.msra.mxu0 0.0
    %1424 = vmatpush.msra.mxu0 0.0
    %1425 = vmatpush.msra.mxu0 0.0
    %1426 = vmatpush.msra.mxu0 0.0
    %1427 = vmatpush.msra.mxu0 %v817
    %1428 = vmatpush.msra.mxu0 %v816
    %1429 = vmatpush.msra.mxu0 %v815
    %1430 = vmatpush.msra.mxu0 %v814
    %1431 = vmatmul.f32.gmra.mxu0 %v1413
    %v1432 = vpop.f32.mrf.mxu0
    %v1433 = vadd.f32 %v878, %v1432
    %1434 = vdwg.mxu0
    %1436 = vrot.lane.b32.xlu0 %v1433, 96
    %v1437 = vpop.permute.xlu0 %1436
    %vm1439 = vcmask 911104
    %1440 = vst.msk [vmem:[%s9] sm:$0x3] %vm1439, %v1437
    %1441 = vmatpush.msra.mxu0 0.0
    %1442 = vmatpush.msra.mxu0 0.0
    %1443 = vmatpush.msra.mxu0 0.0
    %1444 = vmatpush.msra.mxu0 0.0
    %1445 = vmatpush.msra.mxu0 0.0
    %1446 = vmatpush.msra.mxu0 0.0
    %1447 = vmatpush.msra.mxu0 0.0
    %1448 = vmatpush.msra.mxu0 0.0
    %1449 = vmatpush.msra.mxu0 0.0
    %1450 = vmatpush.msra.mxu0 0.0
    %1451 = vmatpush.msra.mxu0 0.0
    %1452 = vmatpush.msra.mxu0 0.0
    %1453 = vmatpush.msra.mxu0 %v813
    %1454 = vmatpush.msra.mxu0 %v812
    %1455 = vmatpush.msra.mxu0 %v811
    %1456 = vmatpush.msra.mxu0 %v810
    %1457 = vmatmul.f32.gmra.mxu0 %v1413
    %v1458 = vpop.f32.mrf.mxu0
    %v1459 = vadd.f32 0.0, %v1458
    %1460 = vdwg.mxu0
    %v1461 = vadd.f32 %v808, %v1459
    %v1462 = vxor.u32 %v1461, 2147483648
    %v1463 = vmul.f32 %v1462, 1.442695
    %v1464 = vpow.pop %v1463
    %v1465 = vadd.f32 %v1464, 1.0
    %v1466 = vrcp.pop %v1465
    %v1467 = vmul.f32 %v1465, %v1466
    %v1468 = vsub.f32 1.0, %v1467
    %v1469 = vmul.f32 %v1466, %v1468
    %v1470 = vadd.f32 %v1466, %v1469
    %vm1471 = vweird.f32 %v1465
    %vm1472 = vweird.f32 %v1466
    %vm1473 = vmor %vm1471, %vm1472
    %v1474 = vsel %vm1473, %v1466, %v1470
    %v1475 = vand.u32 2147483647, %v1465
    %vm1476 = vcmp.eq.f32.partialorder %v1475, 8.507059e+37
    %v1477 = vand.u32 %v1465, 2147483648
    %v1478 = vor.u32 1.1754944e-38, %v1477
    %v1479 = vsel %vm1476, %v1478, %v1474
    %v1480 = vmul.f32 1.0, %v1479
    %v1481 = vtanh.pop %v1461
    %v1482 = vmul.f32 %v1480, %v1403
    %1484 = vrot.lane.b32.xlu0 %v1481, 32
    %v1485 = vpop.permute.xlu0 %1484
    %v1487 = vmul.f32 %v1480, %v1485
    %1489 = vrot.lane.b32.xlu0 %v1487, 32
    %v1490 = vpop.permute.xlu0 %1489
    %v1492 = vadd.f32 %v1482, %v1490
    %v1493 = vtanh.pop %v1492
    %1495 = vrot.lane.b32.xlu0 %v1493, 32
    %v1496 = vpop.permute.xlu0 %1495
    %v1498 = vmul.f32 %v1480, %v1496
    %1500 = vrot.lane.b32.xlu0 %v1498, 64
    %v1501 = vpop.permute.xlu0 %1500
    %v1502 = vsel %vm99, %v1501, 0
    %1504 = vmatpush.msra.mxu0 0.0
    %1505 = vmatpush.msra.mxu0 0.0
    %1506 = vmatpush.msra.mxu0 0.0
    %1507 = vmatpush.msra.mxu0 0.0
    %1508 = vmatpush.msra.mxu0 0.0
    %1509 = vmatpush.msra.mxu0 0.0
    %1510 = vmatpush.msra.mxu0 0.0
    %1511 = vmatpush.msra.mxu0 0.0
    %1512 = vmatpush.msra.mxu0 0.0
    %1513 = vmatpush.msra.mxu0 0.0
    %1514 = vmatpush.msra.mxu0 0.0
    %1515 = vmatpush.msra.mxu0 0.0
    %1516 = vmatpush.msra.mxu0 %v817
    %1517 = vmatpush.msra.mxu0 %v816
    %1518 = vmatpush.msra.mxu0 %v815
    %1519 = vmatpush.msra.mxu0 %v814
    %1520 = vmatmul.f32.gmra.mxu0 %v1502
    %v1521 = vpop.f32.mrf.mxu0
    %v1522 = vadd.f32 %v878, %v1521
    %1523 = vdwg.mxu0
    %1525 = vrot.lane.b32.xlu0 %v1522, 112
    %v1526 = vpop.permute.xlu0 %1525
    %vm1528 = vcmask 1042304
    %1529 = vst.msk [vmem:[%s9] sm:$0x3] %vm1528, %v1526
    // Predicated region
    $region46: #{lstm_autoencoder_forward.1} parent=1 // pred_check
      _
    $region47: #{lstm_autoencoder_forward.1} parent=1 // pred_check_branch
      %1531 = sbr.rel (0) target = $region49
    $region48: #{lstm_autoencoder_forward.1} parent=1 // pred_region
      _
    $region49: #{lstm_autoencoder_forward.1} parent=1 // pred_fallthru
      _
    // Predicated region
    $region50: #{lstm_autoencoder_forward.1} parent=1 // pred_check
      _
    $region51: #{lstm_autoencoder_forward.1} parent=1 // pred_check_branch
      %1533 = sbr.rel (0) target = $region53
    $region52: #{lstm_autoencoder_forward.1} parent=1 // pred_region
      _
    $region53: #{lstm_autoencoder_forward.1} parent=1 // pred_fallthru
      _
    %1534 = vsyncpa [#allocation3], 1
    %1535 = vsyncpa [#allocation5], 1

</llo_original>
